<compile_context>
chip_gen: v7x
topology: tpu7x:2x2x1
jax: 0.10.0
libtpu: 0.0.40
codegen_flags: <defaults>
</compile_context>

<pallas_src>
import functools
import math

import jax
import jax.numpy as jnp
import numpy as np
from jax.experimental import pallas as pl
from jax.experimental.pallas import tpu as pltpu

# ---------------- model dims (small, consistent with BloomAttention) ----------------
BATCH = 2
SEQ = 8
NUM_HEADS = 4
HEAD_DIM = 8
HIDDEN = NUM_HEADS * HEAD_DIM  # 32


# ---------------- fused Pallas kernel ----------------
def _fused_bloom_attn_kernel(
    x_ref,       # [B*S, H]    hidden_states, batch folded into rows
    wqkv_ref,    # [H, 3H]     QKV weight, columns pre-permuted to [q|k|v], head-contiguous
    bqkv_ref,    # [1, 3H]     QKV bias (same permutation)
    alibi_ref,   # [B*NH, S]   alibi (per key position)
    wd_ref,      # [H, H]      dense weight
    bd_ref,      # [1, H]      dense bias
    res_ref,     # [B*S, H]    residual
    o_ref,       # [B*S, H]    output
    ctx_ref,     # [B*S, H]    f32 VMEM scratch: merged-head context accumulator
    *,
    batch,
    num_heads,
    head_dim,
    scale,
):
    BS, H = x_ref.shape
    S = BS // batch

    # Fused QKV projection on the MXU; all B*S rows in one matmul.
    fused = (
        jnp.dot(x_ref[...], wqkv_ref[...], preferred_element_type=jnp.float32)
        + bqkv_ref[...]
    )  # [B*S, 3H]

    # Causal mask built in-kernel (no HBM mask traffic); True where masked.
    row = jax.lax.broadcasted_iota(jnp.int32, (S, S), 0)
    col = jax.lax.broadcasted_iota(jnp.int32, (S, S), 1)
    causal = col > row
    neg = jnp.float32(-1e30)  # large-but-finite fill; diagonal always unmasked

    # Unrolled (batch, head) loops; B*NH = 8 here.
    for b in range(batch):
        r0 = b * S
        for h in range(num_heads):
            c0 = h * head_dim
            q_h = fused[r0:r0 + S, c0:c0 + head_dim]                  # [S, HD]
            k_h = fused[r0:r0 + S, H + c0:H + c0 + head_dim]          # [S, HD]
            v_h = fused[r0:r0 + S, 2 * H + c0:2 * H + c0 + head_dim]  # [S, HD]
            ali = alibi_ref[b * num_heads + h:b * num_heads + h + 1, :]  # [1, S]

            # One fused select: (q k^T * scale + alibi) masked to -1e30 where causal.
            qk = (
                jax.lax.dot_general(
                    q_h, k_h, (((1,), (1,)), ((), ())),
                    preferred_element_type=jnp.float32,
                )
                * scale
                + ali
            )
            scores = jnp.where(causal, neg, qk)                       # [S, S]

            m = jnp.max(scores, axis=-1, keepdims=True)
            p = jnp.exp(scores - m)
            denom = jnp.sum(p, axis=-1, keepdims=True)                # [S, 1]

            # Deferred normalization: PV matmul on unnormalized p, then scale
            # the small [S, HD] result by 1/denom (EUP reciprocal).
            ctx_un = jnp.dot(p, v_h, preferred_element_type=jnp.float32)
            ctx_ref[r0:r0 + S, c0:c0 + head_dim] = (
                ctx_un * pl.reciprocal(denom, approx=True)
            )

    # Dense projection fused with dropout_add residual (dropout p=0 in eval),
    # reading the merged-head slab straight from VMEM scratch.
    out = (
        jnp.dot(ctx_ref[...], wd_ref[...], preferred_element_type=jnp.float32)
        + bd_ref[...]
        + res_ref[...]
    )
    o_ref[...] = out.astype(o_ref.dtype)


# ---------------- pallas_call wrapper ----------------
def fused_bloom_attention(x2d, w_qkv_p, b_qkv_p, alibi2d, w_dense, b_dense, res2d,
                          *, batch, num_heads):
    BS, H = x2d.shape
    S = BS // batch
    HD = H // num_heads
    kernel = functools.partial(
        _fused_bloom_attn_kernel,
        batch=batch,
        num_heads=num_heads,
        head_dim=HD,
        scale=1.0 / math.sqrt(HD),
    )
    return pl.pallas_call(
        kernel,
        out_shape=jax.ShapeDtypeStruct((BS, H), x2d.dtype),
        grid=(1,),  # single step: whole problem in one invocation
        in_specs=[
            pl.BlockSpec((BS, H), lambda i: (0, 0)),                   # hidden_states (batch-folded)
            pl.BlockSpec((H, 3 * H), lambda i: (0, 0)),                # W_qkv (resident)
            pl.BlockSpec((1, 3 * H), lambda i: (0, 0)),                # b_qkv
            pl.BlockSpec((batch * num_heads, S), lambda i: (0, 0)),    # alibi
            pl.BlockSpec((H, H), lambda i: (0, 0)),                    # W_dense (resident)
            pl.BlockSpec((1, H), lambda i: (0, 0)),                    # b_dense
            pl.BlockSpec((BS, H), lambda i: (0, 0)),                   # residual (batch-folded)
        ],
        out_specs=pl.BlockSpec((BS, H), lambda i: (0, 0)),
        scratch_shapes=[pltpu.VMEM((BS, H), jnp.float32)],             # merged-head ctx
        compiler_params=pltpu.CompilerParams(
            dimension_semantics=("arbitrary",)
        ),
    )(x2d, w_qkv_p, b_qkv_p, alibi2d, w_dense, b_dense, res2d)


# ---------------- one-time weight-load transform (hoisted out of the hot path) ----------------
def prepare_bloom_params(params, num_heads, head_dim):
    """Re-layout the interleaved Bloom QKV weight columns [h, (q,k,v), d] into
    [q|k|v] blocks with head-contiguous columns so split_heads is free column
    slicing inside the kernel.  Done ONCE at weight-load time, not per call."""
    H = num_heads * head_dim
    w_qkv_p = (
        params["w_qkv"].reshape(H, num_heads, 3, head_dim)
        .transpose(0, 2, 1, 3)
        .reshape(H, 3 * H)
    )
    b_qkv_p = (
        params["b_qkv"].reshape(num_heads, 3, head_dim)
        .transpose(1, 0, 2)
        .reshape(1, 3 * H)
    )
    return {
        "w_qkv_p": w_qkv_p,
        "b_qkv_p": b_qkv_p,
        "w_dense": params["w_dense"],
        "b_dense": params["b_dense"].reshape(1, H),
    }


# ---------------- forward (only metadata reshapes outside the kernel) ----------------
def bloom_attention_forward(hidden_states, residual, alibi, attention_mask, prepared,
                            *, num_heads):
    # TODO(synk): padding component of attention_mask is not applied; the causal
    # mask is generated in-kernel (eval, no padding).
    del attention_mask
    B, S, H = hidden_states.shape
    alibi2d = alibi.reshape(B * num_heads, S)  # squeeze, no data movement
    out2d = fused_bloom_attention(
        hidden_states.reshape(B * S, H),       # contiguous fold, no transpose
        prepared["w_qkv_p"], prepared["b_qkv_p"], alibi2d,
        prepared["w_dense"], prepared["b_dense"],
        residual.reshape(B * S, H),
        batch=B, num_heads=num_heads,
    )
    return out2d.reshape(B, S, H)


# ---------------- helpers: alibi + causal mask (Bloom conventions) ----------------
def build_alibi_tensor(attn_mask_2d, num_heads, dtype):
    batch_size, seq_length = attn_mask_2d.shape
    closest_pow2 = 2 ** math.floor(math.log2(num_heads))
    base = 2.0 ** (-(2.0 ** -(math.log2(closest_pow2) - 3)))
    powers = np.arange(1, 1 + closest_pow2, dtype=np.float64)
    slopes = base ** powers
    if closest_pow2 != num_heads:
        extra_base = 2.0 ** (-(2.0 ** -(math.log2(2 * closest_pow2) - 3)))
        num_rem = min(closest_pow2, num_heads - closest_pow2)
        extra_powers = np.arange(1, 1 + 2 * num_rem, 2, dtype=np.float64)
        slopes = np.concatenate([slopes, extra_base ** extra_powers], axis=0)
    slopes = jnp.asarray(slopes, dtype=jnp.float32)  # [NH]
    arange_t = (jnp.cumsum(attn_mask_2d, axis=-1) - 1.0) * attn_mask_2d  # [B, S]
    alibi = slopes[None, :, None] * arange_t[:, None, :]  # [B, NH, S]
    return alibi.reshape(batch_size * num_heads, 1, seq_length).astype(dtype)


def build_causal_mask(batch, seq):
    # True where masked (Bloom's combined causal mask, no padding)
    row = jnp.arange(seq)[:, None]
    col = jnp.arange(seq)[None, :]
    causal = col > row  # [S, S]
    return jnp.broadcast_to(causal[None, None, :, :], (batch, 1, seq, seq))


# ---------------- pure-JAX reference for verification ----------------
def reference_forward(hidden_states, residual, alibi, attention_mask, params):
    B, S, H = hidden_states.shape
    fused = hidden_states.reshape(B * S, H) @ params["w_qkv"] + params["b_qkv"]
    fused = fused.reshape(B, S, NUM_HEADS, 3, HEAD_DIM)
    q = jnp.transpose(fused[..., 0, :], (0, 2, 1, 3))
    k = jnp.transpose(fused[..., 1, :], (0, 2, 1, 3))
    v = jnp.transpose(fused[..., 2, :], (0, 2, 1, 3))
    alibi4 = alibi.reshape(B, NUM_HEADS, 1, S)
    bias = jnp.where(attention_mask, jnp.finfo(jnp.float32).min, alibi4)
    scores = jnp.einsum("bhqd,bhkd->bhqk", q, k) / math.sqrt(HEAD_DIM) + bias
    probs = jax.nn.softmax(scores, axis=-1)
    ctx = jnp.einsum("bhqk,bhkd->bhqd", probs, v)
    ctx2d = jnp.transpose(ctx, (0, 2, 1, 3)).reshape(B * S, H)
    out = ctx2d @ params["w_dense"] + params["b_dense"] + residual.reshape(B * S, H)
    return out.reshape(B, S, H)


if __name__ == "__main__":
    key = jax.random.PRNGKey(0)
    k_hs, k_res, k_wqkv, k_bqkv, k_wd, k_bd = jax.random.split(key, 6)

    hidden_states = jax.random.normal(k_hs, (BATCH, SEQ, HIDDEN), dtype=jnp.float32)
    residual = jax.random.normal(k_res, (BATCH, SEQ, HIDDEN), dtype=jnp.float32)

    params = {
        "w_qkv": 0.02 * jax.random.normal(k_wqkv, (HIDDEN, 3 * HIDDEN), jnp.float32),
        "b_qkv": 0.02 * jax.random.normal(k_bqkv, (3 * HIDDEN,), jnp.float32),
        "w_dense": 0.02 * jax.random.normal(k_wd, (HIDDEN, HIDDEN), jnp.float32),
        "b_dense": 0.02 * jax.random.normal(k_bd, (HIDDEN,), jnp.float32),
    }

    # One-time weight-load transform (hoisted out of the per-call path).
    prepared = prepare_bloom_params(params, NUM_HEADS, HEAD_DIM)
    prepared = jax.tree_util.tree_map(jax.block_until_ready, prepared)

    # Bloom-style inputs: alibi [B*NH, 1, S], boolean causal mask [B, 1, S, S]
    pad_mask_2d = jnp.ones((BATCH, SEQ), dtype=jnp.float32)
    alibi = build_alibi_tensor(pad_mask_2d, NUM_HEADS, jnp.float32)
    attention_mask = build_causal_mask(BATCH, SEQ)

    out = bloom_attention_forward(hidden_states, residual, alibi, attention_mask,
                                  prepared, num_heads=NUM_HEADS)
    out = jax.block_until_ready(out)

    ref = reference_forward(hidden_states, residual, alibi, attention_mask, params)
    np.testing.assert_allclose(np.asarray(out), np.asarray(ref), rtol=2e-3, atol=2e-3)

    print("KERNEL_OK")
</pallas_src>

<mosaic_0001>
module attributes {stable_mosaic.version = 11 : i64} {
  func.func @_fused_bloom_attn_kernel(%arg0: i32, %arg1: memref<16x32xf32, #tpu.memory_space<vmem>>, %arg2: memref<32x96xf32, #tpu.memory_space<vmem>>, %arg3: memref<1x96xf32, #tpu.memory_space<vmem>>, %arg4: memref<8x8xf32, #tpu.memory_space<vmem>>, %arg5: memref<32x32xf32, #tpu.memory_space<vmem>>, %arg6: memref<1x32xf32, #tpu.memory_space<vmem>>, %arg7: memref<16x32xf32, #tpu.memory_space<vmem>>, %arg8: memref<16x32xf32, #tpu.memory_space<vmem>>, %arg9: memref<16x32xf32, #tpu.memory_space<vmem>>) attributes {dimension_semantics = [#tpu.dimension_semantics<arbitrary>], iteration_bounds = array<i64: 1>, scalar_prefetch = 0 : i64, scratch_operands = 1 : i64, tpu.core_type = #tpu.core_type<tc>, window_params = [{pipeline_mode = #tpu.pipeline_mode<synchronous>, transform_indices = @transform_0, window_bounds = array<i64: 16, 32>}, {pipeline_mode = #tpu.pipeline_mode<synchronous>, transform_indices = @transform_1, window_bounds = array<i64: 32, 96>}, {pipeline_mode = #tpu.pipeline_mode<synchronous>, transform_indices = @transform_2, window_bounds = array<i64: 1, 96>}, {pipeline_mode = #tpu.pipeline_mode<synchronous>, transform_indices = @transform_3, window_bounds = array<i64: 8, 8>}, {pipeline_mode = #tpu.pipeline_mode<synchronous>, transform_indices = @transform_4, window_bounds = array<i64: 32, 32>}, {pipeline_mode = #tpu.pipeline_mode<synchronous>, transform_indices = @transform_5, window_bounds = array<i64: 1, 32>}, {pipeline_mode = #tpu.pipeline_mode<synchronous>, transform_indices = @transform_6, window_bounds = array<i64: 16, 32>}, {pipeline_mode = #tpu.pipeline_mode<synchronous>, transform_indices = @transform_7, window_bounds = array<i64: 16, 32>}]} {
    %c0 = arith.constant 0 : index
    %c0_0 = arith.constant 0 : index
    %0 = vector.load %arg1[%c0, %c0_0] : memref<16x32xf32, #tpu.memory_space<vmem>>, vector<16x32xf32>
    %c0_1 = arith.constant 0 : index
    %c0_2 = arith.constant 0 : index
    %1 = vector.load %arg2[%c0_1, %c0_2] : memref<32x96xf32, #tpu.memory_space<vmem>>, vector<32x96xf32>
    %cst = arith.constant dense<0.000000e+00> : vector<16x96xf32>
    %2 = tpu.matmul %0, %1, %cst {dimension_numbers = #tpu.dot_dimension_numbers<[1], [0], [0], [1], [0, 0, 1, 1], [], []>} : vector<16x32xf32>, vector<32x96xf32>, vector<16x96xf32> -> vector<16x96xf32>
    %c0_3 = arith.constant 0 : index
    %c0_4 = arith.constant 0 : index
    %3 = vector.load %arg3[%c0_3, %c0_4] : memref<1x96xf32, #tpu.memory_space<vmem>>, vector<1x96xf32>
    %4 = vector.broadcast %3 : vector<1x96xf32> to vector<16x96xf32>
    %5 = arith.addf %2, %4 : vector<16x96xf32>
    %6 = tpu.iota {dimensions = array<i32: 0>} : vector<8x8xi32>
    %7 = tpu.iota {dimensions = array<i32: 1>} : vector<8x8xi32>
    %8 = arith.cmpi sgt, %7, %6 : vector<8x8xi32>
    %9 = vector.extract_strided_slice %5 {offsets = [0, 0], sizes = [8, 8], strides = [1, 1]} : vector<16x96xf32> to vector<8x8xf32>
    %10 = vector.extract_strided_slice %5 {offsets = [0, 32], sizes = [8, 8], strides = [1, 1]} : vector<16x96xf32> to vector<8x8xf32>
    %11 = vector.extract_strided_slice %5 {offsets = [0, 64], sizes = [8, 8], strides = [1, 1]} : vector<16x96xf32> to vector<8x8xf32>
    %c0_5 = arith.constant 0 : index
    %c0_6 = arith.constant 0 : index
    %12 = vector.load %arg4[%c0_5, %c0_6] : memref<8x8xf32, #tpu.memory_space<vmem>>, vector<1x8xf32>
    %cst_7 = arith.constant dense<0.000000e+00> : vector<8x8xf32>
    %13 = tpu.matmul %9, %10, %cst_7 {dimension_numbers = #tpu.dot_dimension_numbers<[1], [1], [0], [0], [0, 0, 1, 0], [], []>} : vector<8x8xf32>, vector<8x8xf32>, vector<8x8xf32> -> vector<8x8xf32>
    %cst_8 = arith.constant 0.353553385 : f32
    %14 = vector.broadcast %cst_8 : f32 to vector<8x8xf32>
    %15 = arith.mulf %13, %14 : vector<8x8xf32>
    %16 = vector.broadcast %12 : vector<1x8xf32> to vector<8x8xf32>
    %17 = arith.addf %15, %16 : vector<8x8xf32>
    %cst_9 = arith.constant -1.000000e+30 : f32
    %18 = vector.broadcast %cst_9 : f32 to vector<8x8xf32>
    %19 = arith.select %8, %18, %17 : vector<8x8xi1>, vector<8x8xf32>
    %cst_10 = arith.constant dense<0xFF800000> : vector<8xf32>
    %20 = vector.multi_reduction <maximumf>, %19, %cst_10 [1] : vector<8x8xf32> to vector<8xf32>
    %21 = vector.shape_cast %20 : vector<8xf32> to vector<8x1xf32>
    %22 = vector.broadcast %21 : vector<8x1xf32> to vector<8x8xf32>
    %23 = arith.subf %19, %22 : vector<8x8xf32>
    %24 = math.exp %23 : vector<8x8xf32>
    %cst_11 = arith.constant dense<0.000000e+00> : vector<8xf32>
    %25 = vector.multi_reduction <add>, %24, %cst_11 [1] : vector<8x8xf32> to vector<8xf32>
    %26 = vector.shape_cast %25 : vector<8xf32> to vector<8x1xf32>
    %cst_12 = arith.constant dense<0.000000e+00> : vector<8x8xf32>
    %27 = tpu.matmul %24, %11, %cst_12 {dimension_numbers = #tpu.dot_dimension_numbers<[1], [0], [0], [1], [0, 0, 1, 1], [], []>} : vector<8x8xf32>, vector<8x8xf32>, vector<8x8xf32> -> vector<8x8xf32>
    %28 = tpu.reciprocal %26 {approx = true} : vector<8x1xf32> -> vector<8x1xf32>
    %29 = vector.broadcast %28 : vector<8x1xf32> to vector<8x8xf32>
    %30 = arith.mulf %27, %29 : vector<8x8xf32>
    %c0_13 = arith.constant 0 : index
    %c0_14 = arith.constant 0 : index
    %31 = vector.load %arg9[%c0_13, %c0_14] : memref<16x32xf32, #tpu.memory_space<vmem>>, vector<8x8xf32>
    tpu.vector_store %arg9[%c0_13, %c0_14], %30 {strides = array<i32>} : memref<16x32xf32, #tpu.memory_space<vmem>>, vector<8x8xf32>,
    %32 = vector.extract_strided_slice %5 {offsets = [0, 8], sizes = [8, 8], strides = [1, 1]} : vector<16x96xf32> to vector<8x8xf32>
    %33 = vector.extract_strided_slice %5 {offsets = [0, 40], sizes = [8, 8], strides = [1, 1]} : vector<16x96xf32> to vector<8x8xf32>
    %34 = vector.extract_strided_slice %5 {offsets = [0, 72], sizes = [8, 8], strides = [1, 1]} : vector<16x96xf32> to vector<8x8xf32>
    %c1 = arith.constant 1 : index
    %c0_15 = arith.constant 0 : index
    %35 = vector.load %arg4[%c1, %c0_15] : memref<8x8xf32, #tpu.memory_space<vmem>>, vector<1x8xf32>
    %cst_16 = arith.constant dense<0.000000e+00> : vector<8x8xf32>
    %36 = tpu.matmul %32, %33, %cst_16 {dimension_numbers = #tpu.dot_dimension_numbers<[1], [1], [0], [0], [0, 0, 1, 0], [], []>} : vector<8x8xf32>, vector<8x8xf32>, vector<8x8xf32> -> vector<8x8xf32>
    %cst_17 = arith.constant 0.353553385 : f32
    %37 = vector.broadcast %cst_17 : f32 to vector<8x8xf32>
    %38 = arith.mulf %36, %37 : vector<8x8xf32>
    %39 = vector.broadcast %35 : vector<1x8xf32> to vector<8x8xf32>
    %40 = arith.addf %38, %39 : vector<8x8xf32>
    %cst_18 = arith.constant -1.000000e+30 : f32
    %41 = vector.broadcast %cst_18 : f32 to vector<8x8xf32>
    %42 = arith.select %8, %41, %40 : vector<8x8xi1>, vector<8x8xf32>
    %cst_19 = arith.constant dense<0xFF800000> : vector<8xf32>
    %43 = vector.multi_reduction <maximumf>, %42, %cst_19 [1] : vector<8x8xf32> to vector<8xf32>
    %44 = vector.shape_cast %43 : vector<8xf32> to vector<8x1xf32>
    %45 = vector.broadcast %44 : vector<8x1xf32> to vector<8x8xf32>
    %46 = arith.subf %42, %45 : vector<8x8xf32>
    %47 = math.exp %46 : vector<8x8xf32>
    %cst_20 = arith.constant dense<0.000000e+00> : vector<8xf32>
    %48 = vector.multi_reduction <add>, %47, %cst_20 [1] : vector<8x8xf32> to vector<8xf32>
    %49 = vector.shape_cast %48 : vector<8xf32> to vector<8x1xf32>
    %cst_21 = arith.constant dense<0.000000e+00> : vector<8x8xf32>
    %50 = tpu.matmul %47, %34, %cst_21 {dimension_numbers = #tpu.dot_dimension_numbers<[1], [0], [0], [1], [0, 0, 1, 1], [], []>} : vector<8x8xf32>, vector<8x8xf32>, vector<8x8xf32> -> vector<8x8xf32>
    %51 = tpu.reciprocal %49 {approx = true} : vector<8x1xf32> -> vector<8x1xf32>
    %52 = vector.broadcast %51 : vector<8x1xf32> to vector<8x8xf32>
    %53 = arith.mulf %50, %52 : vector<8x8xf32>
    %c0_22 = arith.constant 0 : index
    %c8 = arith.constant 8 : index
    %54 = vector.load %arg9[%c0_22, %c8] : memref<16x32xf32, #tpu.memory_space<vmem>>, vector<8x8xf32>
    tpu.vector_store %arg9[%c0_22, %c8], %53 {strides = array<i32>} : memref<16x32xf32, #tpu.memory_space<vmem>>, vector<8x8xf32>,
    %55 = vector.extract_strided_slice %5 {offsets = [0, 16], sizes = [8, 8], strides = [1, 1]} : vector<16x96xf32> to vector<8x8xf32>
    %56 = vector.extract_strided_slice %5 {offsets = [0, 48], sizes = [8, 8], strides = [1, 1]} : vector<16x96xf32> to vector<8x8xf32>
    %57 = vector.extract_strided_slice %5 {offsets = [0, 80], sizes = [8, 8], strides = [1, 1]} : vector<16x96xf32> to vector<8x8xf32>
    %c2 = arith.constant 2 : index
    %c0_23 = arith.constant 0 : index
    %58 = vector.load %arg4[%c2, %c0_23] : memref<8x8xf32, #tpu.memory_space<vmem>>, vector<1x8xf32>
    %cst_24 = arith.constant dense<0.000000e+00> : vector<8x8xf32>
    %59 = tpu.matmul %55, %56, %cst_24 {dimension_numbers = #tpu.dot_dimension_numbers<[1], [1], [0], [0], [0, 0, 1, 0], [], []>} : vector<8x8xf32>, vector<8x8xf32>, vector<8x8xf32> -> vector<8x8xf32>
    %cst_25 = arith.constant 0.353553385 : f32
    %60 = vector.broadcast %cst_25 : f32 to vector<8x8xf32>
    %61 = arith.mulf %59, %60 : vector<8x8xf32>
    %62 = vector.broadcast %58 : vector<1x8xf32> to vector<8x8xf32>
    %63 = arith.addf %61, %62 : vector<8x8xf32>
    %cst_26 = arith.constant -1.000000e+30 : f32
    %64 = vector.broadcast %cst_26 : f32 to vector<8x8xf32>
    %65 = arith.select %8, %64, %63 : vector<8x8xi1>, vector<8x8xf32>
    %cst_27 = arith.constant dense<0xFF800000> : vector<8xf32>
    %66 = vector.multi_reduction <maximumf>, %65, %cst_27 [1] : vector<8x8xf32> to vector<8xf32>
    %67 = vector.shape_cast %66 : vector<8xf32> to vector<8x1xf32>
    %68 = vector.broadcast %67 : vector<8x1xf32> to vector<8x8xf32>
    %69 = arith.subf %65, %68 : vector<8x8xf32>
    %70 = math.exp %69 : vector<8x8xf32>
    %cst_28 = arith.constant dense<0.000000e+00> : vector<8xf32>
    %71 = vector.multi_reduction <add>, %70, %cst_28 [1] : vector<8x8xf32> to vector<8xf32>
    %72 = vector.shape_cast %71 : vector<8xf32> to vector<8x1xf32>
    %cst_29 = arith.constant dense<0.000000e+00> : vector<8x8xf32>
    %73 = tpu.matmul %70, %57, %cst_29 {dimension_numbers = #tpu.dot_dimension_numbers<[1], [0], [0], [1], [0, 0, 1, 1], [], []>} : vector<8x8xf32>, vector<8x8xf32>, vector<8x8xf32> -> vector<8x8xf32>
    %74 = tpu.reciprocal %72 {approx = true} : vector<8x1xf32> -> vector<8x1xf32>
    %75 = vector.broadcast %74 : vector<8x1xf32> to vector<8x8xf32>
    %76 = arith.mulf %73, %75 : vector<8x8xf32>
    %c0_30 = arith.constant 0 : index
    %c16 = arith.constant 16 : index
    %77 = vector.load %arg9[%c0_30, %c16] : memref<16x32xf32, #tpu.memory_space<vmem>>, vector<8x8xf32>
    tpu.vector_store %arg9[%c0_30, %c16], %76 {strides = array<i32>} : memref<16x32xf32, #tpu.memory_space<vmem>>, vector<8x8xf32>,
    %78 = vector.extract_strided_slice %5 {offsets = [0, 24], sizes = [8, 8], strides = [1, 1]} : vector<16x96xf32> to vector<8x8xf32>
    %79 = vector.extract_strided_slice %5 {offsets = [0, 56], sizes = [8, 8], strides = [1, 1]} : vector<16x96xf32> to vector<8x8xf32>
    %80 = vector.extract_strided_slice %5 {offsets = [0, 88], sizes = [8, 8], strides = [1, 1]} : vector<16x96xf32> to vector<8x8xf32>
    %c3 = arith.constant 3 : index
    %c0_31 = arith.constant 0 : index
    %81 = vector.load %arg4[%c3, %c0_31] : memref<8x8xf32, #tpu.memory_space<vmem>>, vector<1x8xf32>
    %cst_32 = arith.constant dense<0.000000e+00> : vector<8x8xf32>
    %82 = tpu.matmul %78, %79, %cst_32 {dimension_numbers = #tpu.dot_dimension_numbers<[1], [1], [0], [0], [0, 0, 1, 0], [], []>} : vector<8x8xf32>, vector<8x8xf32>, vector<8x8xf32> -> vector<8x8xf32>
    %cst_33 = arith.constant 0.353553385 : f32
    %83 = vector.broadcast %cst_33 : f32 to vector<8x8xf32>
    %84 = arith.mulf %82, %83 : vector<8x8xf32>
    %85 = vector.broadcast %81 : vector<1x8xf32> to vector<8x8xf32>
    %86 = arith.addf %84, %85 : vector<8x8xf32>
    %cst_34 = arith.constant -1.000000e+30 : f32
    %87 = vector.broadcast %cst_34 : f32 to vector<8x8xf32>
    %88 = arith.select %8, %87, %86 : vector<8x8xi1>, vector<8x8xf32>
    %cst_35 = arith.constant dense<0xFF800000> : vector<8xf32>
    %89 = vector.multi_reduction <maximumf>, %88, %cst_35 [1] : vector<8x8xf32> to vector<8xf32>
    %90 = vector.shape_cast %89 : vector<8xf32> to vector<8x1xf32>
    %91 = vector.broadcast %90 : vector<8x1xf32> to vector<8x8xf32>
    %92 = arith.subf %88, %91 : vector<8x8xf32>
    %93 = math.exp %92 : vector<8x8xf32>
    %cst_36 = arith.constant dense<0.000000e+00> : vector<8xf32>
    %94 = vector.multi_reduction <add>, %93, %cst_36 [1] : vector<8x8xf32> to vector<8xf32>
    %95 = vector.shape_cast %94 : vector<8xf32> to vector<8x1xf32>
    %cst_37 = arith.constant dense<0.000000e+00> : vector<8x8xf32>
    %96 = tpu.matmul %93, %80, %cst_37 {dimension_numbers = #tpu.dot_dimension_numbers<[1], [0], [0], [1], [0, 0, 1, 1], [], []>} : vector<8x8xf32>, vector<8x8xf32>, vector<8x8xf32> -> vector<8x8xf32>
    %97 = tpu.reciprocal %95 {approx = true} : vector<8x1xf32> -> vector<8x1xf32>
    %98 = vector.broadcast %97 : vector<8x1xf32> to vector<8x8xf32>
    %99 = arith.mulf %96, %98 : vector<8x8xf32>
    %c0_38 = arith.constant 0 : index
    %c24 = arith.constant 24 : index
    %100 = vector.load %arg9[%c0_38, %c24] : memref<16x32xf32, #tpu.memory_space<vmem>>, vector<8x8xf32>
    tpu.vector_store %arg9[%c0_38, %c24], %99 {strides = array<i32>} : memref<16x32xf32, #tpu.memory_space<vmem>>, vector<8x8xf32>,
    %101 = vector.extract_strided_slice %5 {offsets = [8, 0], sizes = [8, 8], strides = [1, 1]} : vector<16x96xf32> to vector<8x8xf32>
    %102 = vector.extract_strided_slice %5 {offsets = [8, 32], sizes = [8, 8], strides = [1, 1]} : vector<16x96xf32> to vector<8x8xf32>
    %103 = vector.extract_strided_slice %5 {offsets = [8, 64], sizes = [8, 8], strides = [1, 1]} : vector<16x96xf32> to vector<8x8xf32>
    %c4 = arith.constant 4 : index
    %c0_39 = arith.constant 0 : index
    %104 = vector.load %arg4[%c4, %c0_39] : memref<8x8xf32, #tpu.memory_space<vmem>>, vector<1x8xf32>
    %cst_40 = arith.constant dense<0.000000e+00> : vector<8x8xf32>
    %105 = tpu.matmul %101, %102, %cst_40 {dimension_numbers = #tpu.dot_dimension_numbers<[1], [1], [0], [0], [0, 0, 1, 0], [], []>} : vector<8x8xf32>, vector<8x8xf32>, vector<8x8xf32> -> vector<8x8xf32>
    %cst_41 = arith.constant 0.353553385 : f32
    %106 = vector.broadcast %cst_41 : f32 to vector<8x8xf32>
    %107 = arith.mulf %105, %106 : vector<8x8xf32>
    %108 = vector.broadcast %104 : vector<1x8xf32> to vector<8x8xf32>
    %109 = arith.addf %107, %108 : vector<8x8xf32>
    %cst_42 = arith.constant -1.000000e+30 : f32
    %110 = vector.broadcast %cst_42 : f32 to vector<8x8xf32>
    %111 = arith.select %8, %110, %109 : vector<8x8xi1>, vector<8x8xf32>
    %cst_43 = arith.constant dense<0xFF800000> : vector<8xf32>
    %112 = vector.multi_reduction <maximumf>, %111, %cst_43 [1] : vector<8x8xf32> to vector<8xf32>
    %113 = vector.shape_cast %112 : vector<8xf32> to vector<8x1xf32>
    %114 = vector.broadcast %113 : vector<8x1xf32> to vector<8x8xf32>
    %115 = arith.subf %111, %114 : vector<8x8xf32>
    %116 = math.exp %115 : vector<8x8xf32>
    %cst_44 = arith.constant dense<0.000000e+00> : vector<8xf32>
    %117 = vector.multi_reduction <add>, %116, %cst_44 [1] : vector<8x8xf32> to vector<8xf32>
    %118 = vector.shape_cast %117 : vector<8xf32> to vector<8x1xf32>
    %cst_45 = arith.constant dense<0.000000e+00> : vector<8x8xf32>
    %119 = tpu.matmul %116, %103, %cst_45 {dimension_numbers = #tpu.dot_dimension_numbers<[1], [0], [0], [1], [0, 0, 1, 1], [], []>} : vector<8x8xf32>, vector<8x8xf32>, vector<8x8xf32> -> vector<8x8xf32>
    %120 = tpu.reciprocal %118 {approx = true} : vector<8x1xf32> -> vector<8x1xf32>
    %121 = vector.broadcast %120 : vector<8x1xf32> to vector<8x8xf32>
    %122 = arith.mulf %119, %121 : vector<8x8xf32>
    %c8_46 = arith.constant 8 : index
    %c0_47 = arith.constant 0 : index
    %123 = vector.load %arg9[%c8_46, %c0_47] : memref<16x32xf32, #tpu.memory_space<vmem>>, vector<8x8xf32>
    tpu.vector_store %arg9[%c8_46, %c0_47], %122 {strides = array<i32>} : memref<16x32xf32, #tpu.memory_space<vmem>>, vector<8x8xf32>,
    %124 = vector.extract_strided_slice %5 {offsets = [8, 8], sizes = [8, 8], strides = [1, 1]} : vector<16x96xf32> to vector<8x8xf32>
    %125 = vector.extract_strided_slice %5 {offsets = [8, 40], sizes = [8, 8], strides = [1, 1]} : vector<16x96xf32> to vector<8x8xf32>
    %126 = vector.extract_strided_slice %5 {offsets = [8, 72], sizes = [8, 8], strides = [1, 1]} : vector<16x96xf32> to vector<8x8xf32>
    %c5 = arith.constant 5 : index
    %c0_48 = arith.constant 0 : index
    %127 = vector.load %arg4[%c5, %c0_48] : memref<8x8xf32, #tpu.memory_space<vmem>>, vector<1x8xf32>
    %cst_49 = arith.constant dense<0.000000e+00> : vector<8x8xf32>
    %128 = tpu.matmul %124, %125, %cst_49 {dimension_numbers = #tpu.dot_dimension_numbers<[1], [1], [0], [0], [0, 0, 1, 0], [], []>} : vector<8x8xf32>, vector<8x8xf32>, vector<8x8xf32> -> vector<8x8xf32>
    %cst_50 = arith.constant 0.353553385 : f32
    %129 = vector.broadcast %cst_50 : f32 to vector<8x8xf32>
    %130 = arith.mulf %128, %129 : vector<8x8xf32>
    %131 = vector.broadcast %127 : vector<1x8xf32> to vector<8x8xf32>
    %132 = arith.addf %130, %131 : vector<8x8xf32>
    %cst_51 = arith.constant -1.000000e+30 : f32
    %133 = vector.broadcast %cst_51 : f32 to vector<8x8xf32>
    %134 = arith.select %8, %133, %132 : vector<8x8xi1>, vector<8x8xf32>
    %cst_52 = arith.constant dense<0xFF800000> : vector<8xf32>
    %135 = vector.multi_reduction <maximumf>, %134, %cst_52 [1] : vector<8x8xf32> to vector<8xf32>
    %136 = vector.shape_cast %135 : vector<8xf32> to vector<8x1xf32>
    %137 = vector.broadcast %136 : vector<8x1xf32> to vector<8x8xf32>
    %138 = arith.subf %134, %137 : vector<8x8xf32>
    %139 = math.exp %138 : vector<8x8xf32>
    %cst_53 = arith.constant dense<0.000000e+00> : vector<8xf32>
    %140 = vector.multi_reduction <add>, %139, %cst_53 [1] : vector<8x8xf32> to vector<8xf32>
    %141 = vector.shape_cast %140 : vector<8xf32> to vector<8x1xf32>
    %cst_54 = arith.constant dense<0.000000e+00> : vector<8x8xf32>
    %142 = tpu.matmul %139, %126, %cst_54 {dimension_numbers = #tpu.dot_dimension_numbers<[1], [0], [0], [1], [0, 0, 1, 1], [], []>} : vector<8x8xf32>, vector<8x8xf32>, vector<8x8xf32> -> vector<8x8xf32>
    %143 = tpu.reciprocal %141 {approx = true} : vector<8x1xf32> -> vector<8x1xf32>
    %144 = vector.broadcast %143 : vector<8x1xf32> to vector<8x8xf32>
    %145 = arith.mulf %142, %144 : vector<8x8xf32>
    %c8_55 = arith.constant 8 : index
    %c8_56 = arith.constant 8 : index
    %146 = vector.load %arg9[%c8_55, %c8_56] : memref<16x32xf32, #tpu.memory_space<vmem>>, vector<8x8xf32>
    tpu.vector_store %arg9[%c8_55, %c8_56], %145 {strides = array<i32>} : memref<16x32xf32, #tpu.memory_space<vmem>>, vector<8x8xf32>,
    %147 = vector.extract_strided_slice %5 {offsets = [8, 16], sizes = [8, 8], strides = [1, 1]} : vector<16x96xf32> to vector<8x8xf32>
    %148 = vector.extract_strided_slice %5 {offsets = [8, 48], sizes = [8, 8], strides = [1, 1]} : vector<16x96xf32> to vector<8x8xf32>
    %149 = vector.extract_strided_slice %5 {offsets = [8, 80], sizes = [8, 8], strides = [1, 1]} : vector<16x96xf32> to vector<8x8xf32>
    %c6 = arith.constant 6 : index
    %c0_57 = arith.constant 0 : index
    %150 = vector.load %arg4[%c6, %c0_57] : memref<8x8xf32, #tpu.memory_space<vmem>>, vector<1x8xf32>
    %cst_58 = arith.constant dense<0.000000e+00> : vector<8x8xf32>
    %151 = tpu.matmul %147, %148, %cst_58 {dimension_numbers = #tpu.dot_dimension_numbers<[1], [1], [0], [0], [0, 0, 1, 0], [], []>} : vector<8x8xf32>, vector<8x8xf32>, vector<8x8xf32> -> vector<8x8xf32>
    %cst_59 = arith.constant 0.353553385 : f32
    %152 = vector.broadcast %cst_59 : f32 to vector<8x8xf32>
    %153 = arith.mulf %151, %152 : vector<8x8xf32>
    %154 = vector.broadcast %150 : vector<1x8xf32> to vector<8x8xf32>
    %155 = arith.addf %153, %154 : vector<8x8xf32>
    %cst_60 = arith.constant -1.000000e+30 : f32
    %156 = vector.broadcast %cst_60 : f32 to vector<8x8xf32>
    %157 = arith.select %8, %156, %155 : vector<8x8xi1>, vector<8x8xf32>
    %cst_61 = arith.constant dense<0xFF800000> : vector<8xf32>
    %158 = vector.multi_reduction <maximumf>, %157, %cst_61 [1] : vector<8x8xf32> to vector<8xf32>
    %159 = vector.shape_cast %158 : vector<8xf32> to vector<8x1xf32>
    %160 = vector.broadcast %159 : vector<8x1xf32> to vector<8x8xf32>
    %161 = arith.subf %157, %160 : vector<8x8xf32>
    %162 = math.exp %161 : vector<8x8xf32>
    %cst_62 = arith.constant dense<0.000000e+00> : vector<8xf32>
    %163 = vector.multi_reduction <add>, %162, %cst_62 [1] : vector<8x8xf32> to vector<8xf32>
    %164 = vector.shape_cast %163 : vector<8xf32> to vector<8x1xf32>
    %cst_63 = arith.constant dense<0.000000e+00> : vector<8x8xf32>
    %165 = tpu.matmul %162, %149, %cst_63 {dimension_numbers = #tpu.dot_dimension_numbers<[1], [0], [0], [1], [0, 0, 1, 1], [], []>} : vector<8x8xf32>, vector<8x8xf32>, vector<8x8xf32> -> vector<8x8xf32>
    %166 = tpu.reciprocal %164 {approx = true} : vector<8x1xf32> -> vector<8x1xf32>
    %167 = vector.broadcast %166 : vector<8x1xf32> to vector<8x8xf32>
    %168 = arith.mulf %165, %167 : vector<8x8xf32>
    %c8_64 = arith.constant 8 : index
    %c16_65 = arith.constant 16 : index
    %169 = vector.load %arg9[%c8_64, %c16_65] : memref<16x32xf32, #tpu.memory_space<vmem>>, vector<8x8xf32>
    tpu.vector_store %arg9[%c8_64, %c16_65], %168 {strides = array<i32>} : memref<16x32xf32, #tpu.memory_space<vmem>>, vector<8x8xf32>,
    %170 = vector.extract_strided_slice %5 {offsets = [8, 24], sizes = [8, 8], strides = [1, 1]} : vector<16x96xf32> to vector<8x8xf32>
    %171 = vector.extract_strided_slice %5 {offsets = [8, 56], sizes = [8, 8], strides = [1, 1]} : vector<16x96xf32> to vector<8x8xf32>
    %172 = vector.extract_strided_slice %5 {offsets = [8, 88], sizes = [8, 8], strides = [1, 1]} : vector<16x96xf32> to vector<8x8xf32>
    %c7 = arith.constant 7 : index
    %c0_66 = arith.constant 0 : index
    %173 = vector.load %arg4[%c7, %c0_66] : memref<8x8xf32, #tpu.memory_space<vmem>>, vector<1x8xf32>
    %cst_67 = arith.constant dense<0.000000e+00> : vector<8x8xf32>
    %174 = tpu.matmul %170, %171, %cst_67 {dimension_numbers = #tpu.dot_dimension_numbers<[1], [1], [0], [0], [0, 0, 1, 0], [], []>} : vector<8x8xf32>, vector<8x8xf32>, vector<8x8xf32> -> vector<8x8xf32>
    %cst_68 = arith.constant 0.353553385 : f32
    %175 = vector.broadcast %cst_68 : f32 to vector<8x8xf32>
    %176 = arith.mulf %174, %175 : vector<8x8xf32>
    %177 = vector.broadcast %173 : vector<1x8xf32> to vector<8x8xf32>
    %178 = arith.addf %176, %177 : vector<8x8xf32>
    %cst_69 = arith.constant -1.000000e+30 : f32
    %179 = vector.broadcast %cst_69 : f32 to vector<8x8xf32>
    %180 = arith.select %8, %179, %178 : vector<8x8xi1>, vector<8x8xf32>
    %cst_70 = arith.constant dense<0xFF800000> : vector<8xf32>
    %181 = vector.multi_reduction <maximumf>, %180, %cst_70 [1] : vector<8x8xf32> to vector<8xf32>
    %182 = vector.shape_cast %181 : vector<8xf32> to vector<8x1xf32>
    %183 = vector.broadcast %182 : vector<8x1xf32> to vector<8x8xf32>
    %184 = arith.subf %180, %183 : vector<8x8xf32>
    %185 = math.exp %184 : vector<8x8xf32>
    %cst_71 = arith.constant dense<0.000000e+00> : vector<8xf32>
    %186 = vector.multi_reduction <add>, %185, %cst_71 [1] : vector<8x8xf32> to vector<8xf32>
    %187 = vector.shape_cast %186 : vector<8xf32> to vector<8x1xf32>
    %cst_72 = arith.constant dense<0.000000e+00> : vector<8x8xf32>
    %188 = tpu.matmul %185, %172, %cst_72 {dimension_numbers = #tpu.dot_dimension_numbers<[1], [0], [0], [1], [0, 0, 1, 1], [], []>} : vector<8x8xf32>, vector<8x8xf32>, vector<8x8xf32> -> vector<8x8xf32>
    %189 = tpu.reciprocal %187 {approx = true} : vector<8x1xf32> -> vector<8x1xf32>
    %190 = vector.broadcast %189 : vector<8x1xf32> to vector<8x8xf32>
    %191 = arith.mulf %188, %190 : vector<8x8xf32>
    %c8_73 = arith.constant 8 : index
    %c24_74 = arith.constant 24 : index
    %192 = vector.load %arg9[%c8_73, %c24_74] : memref<16x32xf32, #tpu.memory_space<vmem>>, vector<8x8xf32>
    tpu.vector_store %arg9[%c8_73, %c24_74], %191 {strides = array<i32>} : memref<16x32xf32, #tpu.memory_space<vmem>>, vector<8x8xf32>,
    %c0_75 = arith.constant 0 : index
    %c0_76 = arith.constant 0 : index
    %193 = vector.load %arg9[%c0_75, %c0_76] : memref<16x32xf32, #tpu.memory_space<vmem>>, vector<16x32xf32>
    %c0_77 = arith.constant 0 : index
    %c0_78 = arith.constant 0 : index
    %194 = vector.load %arg5[%c0_77, %c0_78] : memref<32x32xf32, #tpu.memory_space<vmem>>, vector<32x32xf32>
    %cst_79 = arith.constant dense<0.000000e+00> : vector<16x32xf32>
    %195 = tpu.matmul %193, %194, %cst_79 {dimension_numbers = #tpu.dot_dimension_numbers<[1], [0], [0], [1], [0, 0, 1, 1], [], []>} : vector<16x32xf32>, vector<32x32xf32>, vector<16x32xf32> -> vector<16x32xf32>
    %c0_80 = arith.constant 0 : index
    %c0_81 = arith.constant 0 : index
    %196 = vector.load %arg6[%c0_80, %c0_81] : memref<1x32xf32, #tpu.memory_space<vmem>>, vector<1x32xf32>
    %197 = vector.broadcast %196 : vector<1x32xf32> to vector<16x32xf32>
    %198 = arith.addf %195, %197 : vector<16x32xf32>
    %c0_82 = arith.constant 0 : index
    %c0_83 = arith.constant 0 : index
    %199 = vector.load %arg7[%c0_82, %c0_83] : memref<16x32xf32, #tpu.memory_space<vmem>>, vector<16x32xf32>
    %200 = arith.addf %198, %199 : vector<16x32xf32>
    %c0_84 = arith.constant 0 : index
    %c0_85 = arith.constant 0 : index
    %201 = vector.load %arg8[%c0_84, %c0_85] : memref<16x32xf32, #tpu.memory_space<vmem>>, vector<16x32xf32>
    tpu.vector_store %arg8[%c0_84, %c0_85], %200 {strides = array<i32>} : memref<16x32xf32, #tpu.memory_space<vmem>>, vector<16x32xf32>,
    return
  }
  func.func @transform_0(%arg0: i32) -> (i32, i32) {
    %c0_i32 = arith.constant 0 : i32
    %c0_i32_0 = arith.constant 0 : i32
    %c0_i32_1 = arith.constant 0 : i32
    return %c0_i32, %c0_i32_0 : i32, i32
  }
  func.func @transform_1(%arg0: i32) -> (i32, i32) {
    %c0_i32 = arith.constant 0 : i32
    %c0_i32_0 = arith.constant 0 : i32
    %c0_i32_1 = arith.constant 0 : i32
    return %c0_i32, %c0_i32_0 : i32, i32
  }
  func.func @transform_2(%arg0: i32) -> (i32, i32) {
    %c0_i32 = arith.constant 0 : i32
    %c0_i32_0 = arith.constant 0 : i32
    %c0_i32_1 = arith.constant 0 : i32
    return %c0_i32, %c0_i32_0 : i32, i32
  }
  func.func @transform_3(%arg0: i32) -> (i32, i32) {
    %c0_i32 = arith.constant 0 : i32
    %c0_i32_0 = arith.constant 0 : i32
    %c0_i32_1 = arith.constant 0 : i32
    return %c0_i32, %c0_i32_0 : i32, i32
  }
  func.func @transform_4(%arg0: i32) -> (i32, i32) {
    %c0_i32 = arith.constant 0 : i32
    %c0_i32_0 = arith.constant 0 : i32
    %c0_i32_1 = arith.constant 0 : i32
    return %c0_i32, %c0_i32_0 : i32, i32
  }
  func.func @transform_5(%arg0: i32) -> (i32, i32) {
    %c0_i32 = arith.constant 0 : i32
    %c0_i32_0 = arith.constant 0 : i32
    %c0_i32_1 = arith.constant 0 : i32
    return %c0_i32, %c0_i32_0 : i32, i32
  }
  func.func @transform_6(%arg0: i32) -> (i32, i32) {
    %c0_i32 = arith.constant 0 : i32
    %c0_i32_0 = arith.constant 0 : i32
    %c0_i32_1 = arith.constant 0 : i32
    return %c0_i32, %c0_i32_0 : i32, i32
  }
  func.func @transform_7(%arg0: i32) -> (i32, i32) {
    %c0_i32 = arith.constant 0 : i32
    %c0_i32_0 = arith.constant 0 : i32
    %c0_i32_1 = arith.constant 0 : i32
    return %c0_i32, %c0_i32_0 : i32, i32
  }
}

</mosaic_0001>

<llo_original>
// kernel: tpu_custom_call.1
$region0: #{tpu_custom_call.1}
  #allocation0 [shape = 'u32[]', space=smem, size = 0x4, offset = 0x4, fixed_abs, tag = 'smem constant byte address 0x4 - core index']
  #allocation1 [shape = 'u32[144,128]{1,0:T(1,128)}', space=vmem, size = 0x12000, scoped, tag = 'internal scratch']
  #allocation2 [shape = 'f32[16,32]{1,0:T(8,128)}', space=vmem, size = 0x2000, scoped, tag = 'scratch operand']
  %s0 = inlined_call_operand.hbm [shape: f32[16,32], index: 0, kind: input, shape index: {}]
  %s1 = inlined_call_operand.hbm [shape: f32[32,96], index: 1, kind: input, shape index: {}]
  %s2 = inlined_call_operand.vmem [shape: f32[1,96], index: 2, kind: input, shape index: {}]
  %s3 = inlined_call_operand.hbm [shape: f32[8,8], index: 3, kind: input, shape index: {}]
  %s4 = inlined_call_operand.hbm [shape: f32[32,32], index: 4, kind: input, shape index: {}]
  %s5 = inlined_call_operand.vmem [shape: f32[1,32], index: 5, kind: input, shape index: {}]
  %s6 = inlined_call_operand.vmem [shape: f32[16,32], index: 6, kind: input, shape index: {}]
  %s7 = inlined_call_operand.hbm [shape: f32[16,32], index: 7, kind: output, shape index: {}]
  %s8 = sld [smem:[#allocation0]]
  $region54: #{tpu_custom_call.1} parent=0
    _
  %s10 = ssub.s32 1, %s8
  %s11 = scalar_select 0, %s10, %s8
  $region1: #{tpu_custom_call.1} parent=0
    #allocation3 [shape = 'u8[8192]{0}', space=vmem, size = 0x2000, scoped, tag = 'input window, operand 0, single buffered']
    #allocation4 [shape = 's32[1]{0}', space=sflag, size = 0x4, scoped, tag = 'scoped memory for tpu_custom_call.1']
    #allocation5 [shape = 's32[1]{0}', space=sflag, size = 0x4, scoped, tag = 'scoped memory for tpu_custom_call.1']
    #allocation6 [shape = 'u8[16384]{0}', space=vmem, size = 0x4000, scoped, tag = 'input window, operand 1, single buffered']
    #allocation7 [shape = 's32[1]{0}', space=sflag, size = 0x4, scoped, tag = 'scoped memory for tpu_custom_call.1']
    #allocation8 [shape = 'u8[4096]{0}', space=vmem, size = 0x1000, scoped, tag = 'input window, operand 3, single buffered']
    #allocation9 [shape = 'u8[16384]{0}', space=vmem, size = 0x4000, scoped, tag = 'input window, operand 4, single buffered']
    #allocation10 [shape = 's32[1]{0}', space=sflag, size = 0x4, scoped, tag = 'scoped memory for tpu_custom_call.1']
    #allocation11 [shape = 'u8[8192]{0}', space=vmem, size = 0x2000, scoped, tag = 'output window, operand 0, single buffered']
    %12 = vsyncpa [#allocation4], 0
    %13 = vsyncpa [#allocation7], 0
    %14 = vsyncpa [#allocation10], 0
    %15 = vsyncpa [#allocation5], 0
    // Predicated region
    $region2: #{tpu_custom_call.1} parent=1 // pred_check
      _
    $region3: #{tpu_custom_call.1} parent=1 // pred_check_branch
      %17 = sbr.rel (0) target = $region5
    $region4: #{tpu_custom_call.1} parent=1 // pred_region
      %s19 = ssub.s32 256, 256
      %20 = vsyncadd [#allocation4], %s19
      %s21 = sshll.u32 [#allocation3], 4
      %s22 = int_to_ptr.vmem [resolvable:$true] %s21
      %27 = dma.hbm_to_vmem [thread:$0]  %s0, 256, %s22, [#allocation4], 128, 128, 8
    $region5: #{tpu_custom_call.1} parent=1 // pred_fallthru
      _
    // Predicated region
    $region6: #{tpu_custom_call.1} parent=1 // pred_check
      _
    $region7: #{tpu_custom_call.1} parent=1 // pred_check_branch
      %29 = sbr.rel (0) target = $region9
    $region8: #{tpu_custom_call.1} parent=1 // pred_region
      %s31 = ssub.s32 512, 512
      %32 = vsyncadd [#allocation7], %s31
      %s33 = sshll.u32 [#allocation6], 4
      %s34 = int_to_ptr.vmem [resolvable:$true] %s33
      %39 = dma.hbm_to_vmem [thread:$0]  %s1, 512, %s34, [#allocation7], 128, 128, 8
    $region9: #{tpu_custom_call.1} parent=1 // pred_fallthru
      _
    // Predicated region
    $region10: #{tpu_custom_call.1} parent=1 // pred_check
      _
    $region11: #{tpu_custom_call.1} parent=1 // pred_check_branch
      %41 = sbr.rel (0) target = $region13
    $region12: #{tpu_custom_call.1} parent=1 // pred_region
      _
    $region13: #{tpu_custom_call.1} parent=1 // pred_fallthru
      _
    // Predicated region
    $region14: #{tpu_custom_call.1} parent=1 // pred_check
      _
    $region15: #{tpu_custom_call.1} parent=1 // pred_check_branch
      %43 = sbr.rel (0) target = $region17
    $region16: #{tpu_custom_call.1} parent=1 // pred_region
      %s45 = ssub.s32 128, 128
      %46 = vsyncadd [#allocation7], %s45
      %s48 = sshll.u32 [#allocation8], 4
      %s49 = int_to_ptr.vmem [resolvable:$true] %s48
      %51 = dma.hbm_to_vmem [thread:$0]  %s3, 128, %s49, [#allocation7]
    $region17: #{tpu_custom_call.1} parent=1 // pred_fallthru
      _
    // Predicated region
    $region18: #{tpu_custom_call.1} parent=1 // pred_check
      _
    $region19: #{tpu_custom_call.1} parent=1 // pred_check_branch
      %53 = sbr.rel (0) target = $region21
    $region20: #{tpu_custom_call.1} parent=1 // pred_region
      %s55 = ssub.s32 512, 512
      %56 = vsyncadd [#allocation10], %s55
      %s57 = sshll.u32 [#allocation9], 4
      %s58 = int_to_ptr.vmem [resolvable:$true] %s57
      %63 = dma.hbm_to_vmem [thread:$0]  %s4, 512, %s58, [#allocation10], 128, 128, 8
    $region21: #{tpu_custom_call.1} parent=1 // pred_fallthru
      _
    // Predicated region
    $region22: #{tpu_custom_call.1} parent=1 // pred_check
      _
    $region23: #{tpu_custom_call.1} parent=1 // pred_check_branch
      %65 = sbr.rel (0) target = $region25
    $region24: #{tpu_custom_call.1} parent=1 // pred_region
      _
    $region25: #{tpu_custom_call.1} parent=1 // pred_fallthru
      _
    // Predicated region
    $region26: #{tpu_custom_call.1} parent=1 // pred_check
      _
    $region27: #{tpu_custom_call.1} parent=1 // pred_check_branch
      %67 = sbr.rel (0) target = $region29
    $region28: #{tpu_custom_call.1} parent=1 // pred_region
      _
    $region29: #{tpu_custom_call.1} parent=1 // pred_fallthru
      _
    // Predicated region
    $region30: #{tpu_custom_call.1} parent=1 // pred_check
      _
    $region31: #{tpu_custom_call.1} parent=1 // pred_check_branch
      %69 = sbr.rel (0) target = $region33
    $region32: #{tpu_custom_call.1} parent=1 // pred_region
      %70 = dma.done [#allocation4], 256
    $region33: #{tpu_custom_call.1} parent=1 // pred_fallthru
      _
    // Predicated region
    $region34: #{tpu_custom_call.1} parent=1 // pred_check
      _
    $region35: #{tpu_custom_call.1} parent=1 // pred_check_branch
      %72 = sbr.rel (0) target = $region37
    $region36: #{tpu_custom_call.1} parent=1 // pred_region
      %73 = dma.done [#allocation7], 512
    $region37: #{tpu_custom_call.1} parent=1 // pred_fallthru
      _
    // Predicated region
    $region38: #{tpu_custom_call.1} parent=1 // pred_check
      _
    $region39: #{tpu_custom_call.1} parent=1 // pred_check_branch
      %75 = sbr.rel (0) target = $region41
    $region40: #{tpu_custom_call.1} parent=1 // pred_region
      %76 = dma.done [#allocation7], 128
    $region41: #{tpu_custom_call.1} parent=1 // pred_fallthru
      _
    // Predicated region
    $region42: #{tpu_custom_call.1} parent=1 // pred_check
      _
    $region43: #{tpu_custom_call.1} parent=1 // pred_check_branch
      %78 = sbr.rel (0) target = $region45
    $region44: #{tpu_custom_call.1} parent=1 // pred_region
      %79 = dma.done [#allocation10], 512
    $region45: #{tpu_custom_call.1} parent=1 // pred_fallthru
      _
    %v80 = vld [vmem:[#allocation3] sm:$0xff]
    %v81 = vld [vmem:[#allocation3 + $0x8] sm:$0xff]
    %v82 = vld [vmem:[#allocation6] sm:$0xff]
    %v83 = vld [vmem:[#allocation6 + $0x8] sm:$0xff]
    %v84 = vld [vmem:[#allocation6 + $0x10] sm:$0xff]
    %v85 = vld [vmem:[#allocation6 + $0x18] sm:$0xff]
    %v86 = vld [vmem:[%s2] sm:$0x1]
    %v88 = vlaneseq
    %v89 = vshrl.u32 %v88, 7
    %v90 = vsub.s32 0, %v89
    %v91 = vrot.slane %v86, %v90
    %vm93 = vcmask 261120
    %v95 = vsel %vm93, %v80, 0
    %v98 = vsel %vm93, %v81, 0
    %100 = vmatprep.subr.mxu0 0.0
    %101 = vmatpush1.msra.mxu0 %v82
    %102 = vmatprep.subr.mxu0 0.0
    %103 = vmatpush1.msra.mxu0 %v83
    %104 = vmatprep.subr.mxu0 0.0
    %105 = vmatpush1.msra.mxu0 %v84
    %106 = vmatprep.subr.mxu0 0.0
    %107 = vmatpush1.msra.mxu0 %v85
    %108 = vmatprep.subr.mxu0 0.0
    %109 = vmatpush1.msra.mxu0 0.0
    %110 = vmatprep.subr.mxu0 0.0
    %111 = vmatpush1.msra.mxu0 0.0
    %112 = vmatprep.subr.mxu0 0.0
    %113 = vmatpush1.msra.mxu0 0.0
    %114 = vmatprep.subr.mxu0 0.0
    %115 = vmatpush1.msra.mxu0 0.0
    %116 = vmatprep.subr.mxu0 0.0
    %117 = vmatpush1.msra.mxu0 0.0
    %118 = vmatprep.subr.mxu0 0.0
    %119 = vmatpush1.msra.mxu0 0.0
    %120 = vmatprep.subr.mxu0 0.0
    %121 = vmatpush1.msra.mxu0 0.0
    %122 = vmatprep.subr.mxu0 0.0
    %123 = vmatpush1.msra.mxu0 0.0
    %124 = vmatprep.subr.mxu0 0.0
    %125 = vmatpush1.msra.mxu0 0.0
    %126 = vmatprep.subr.mxu0 0.0
    %127 = vmatpush1.msra.mxu0 0.0
    %128 = vmatprep.subr.mxu0 0.0
    %129 = vmatpush1.msra.mxu0 0.0
    %130 = vmatprep.subr.mxu0 0.0
    %131 = vmatpush1.msra.mxu0 0.0
    %132 = vmatprep.subr.mxu0 0.0
    %133 = vmatpush1.msra.mxu0 0.0
    %134 = vmatprep.subr.mxu0 0.0
    %135 = vmatpush1.msra.mxu0 0.0
    %136 = vmatprep.subr.mxu0 0.0
    %137 = vmatpush1.msra.mxu0 0.0
    %138 = vmatprep.subr.mxu0 0.0
    %139 = vmatpush1.msra.mxu0 0.0
    %140 = vmatprep.subr.mxu0 0.0
    %141 = vmatpush1.msra.mxu0 0.0
    %142 = vmatprep.subr.mxu0 0.0
    %143 = vmatpush1.msra.mxu0 0.0
    %144 = vmatprep.subr.mxu0 0.0
    %145 = vmatpush1.msra.mxu0 0.0
    %146 = vmatprep.subr.mxu0 0.0
    %147 = vmatpush1.msra.mxu0 0.0
    %148 = vmatprep.subr.mxu0 0.0
    %149 = vmatpush1.msra.mxu0 0.0
    %150 = vmatprep.subr.mxu0 0.0
    %151 = vmatpush1.msra.mxu0 0.0
    %152 = vmatprep.subr.mxu0 0.0
    %153 = vmatpush1.msra.mxu0 0.0
    %154 = vmatprep.subr.mxu0 0.0
    %155 = vmatpush1.msra.mxu0 0.0
    %156 = vmatprep.subr.mxu0 0.0
    %157 = vmatpush1.msra.mxu0 0.0
    %158 = vmatprep.subr.mxu0 0.0
    %159 = vmatpush1.msra.mxu0 0.0
    %160 = vmatprep.subr.mxu0 0.0
    %161 = vmatpush1.msra.mxu0 0.0
    %162 = vmatprep.subr.mxu0 0.0
    %163 = vmatpush1.msra.mxu0 0.0
    %164 = vmatprep.mubr.f32.mxu0 0.0
    %165 = vmatmul.mubr.f32.gmra.mrb[0].mxu0 %v95
    %v166 = vpop.f32.mrb[0].mxu0
    %v167 = vadd.f32 %v91, %v166
    %v168 = vpop.f32.mrb[0].mxu0
    %169 = vmatprep.mubr.f32.mxu0 0.0
    %170 = vmatmul.mubr.f32.gmra.mrb[0].mxu0 %v98
    %v171 = vpop.f32.mrb[0].mxu0
    %v172 = vadd.f32 %v91, %v171
    %v173 = vpop.f32.mrb[0].mxu0
    %174 = vdwg.mxu0
    %v175 = vlaneseq
    %v176 = vshrl.u32 %v175, 7
    %v177 = vlaneseq
    %v178 = vand.u32 %v177, 127
    %vm179 = vcmp.gt.s32.totalorder %v178, %v176
    %v180 = vld [vmem:[#allocation8] sm:$0x1]
    %182 = vrot.lane.b32.xlu0 %v167, 96
    %v183 = vpop.permute.xlu0 %182
    %vm184 = vcmask 64512
    %v185 = vsel %vm184, %v167, 0
    %v187 = vsel %vm184, %v183, 0
    %189 = vmatprep.subr.mxu0 0.0
    %190 = vmatpush1.xpose.msra.mxu0 %v187
    %191 = vmatprep.subr.mxu0 0.0
    %192 = vmatpush1.xpose.msra.mxu0 0.0
    %193 = vmatprep.subr.mxu0 0.0
    %194 = vmatpush1.xpose.msra.mxu0 0.0
    %195 = vmatprep.subr.mxu0 0.0
    %196 = vmatpush1.xpose.msra.mxu0 0.0
    %197 = vmatprep.subr.mxu0 0.0
    %198 = vmatpush1.xpose.msra.mxu0 0.0
    %199 = vmatprep.subr.mxu0 0.0
    %200 = vmatpush1.xpose.msra.mxu0 0.0
    %201 = vmatprep.subr.mxu0 0.0
    %202 = vmatpush1.xpose.msra.mxu0 0.0
    %203 = vmatprep.subr.mxu0 0.0
    %204 = vmatpush1.xpose.msra.mxu0 0.0
    %205 = vmatprep.subr.mxu0 0.0
    %206 = vmatpush1.xpose.msra.mxu0 0.0
    %207 = vmatprep.subr.mxu0 0.0
    %208 = vmatpush1.xpose.msra.mxu0 0.0
    %209 = vmatprep.subr.mxu0 0.0
    %210 = vmatpush1.xpose.msra.mxu0 0.0
    %211 = vmatprep.subr.mxu0 0.0
    %212 = vmatpush1.xpose.msra.mxu0 0.0
    %213 = vmatprep.subr.mxu0 0.0
    %214 = vmatpush1.xpose.msra.mxu0 0.0
    %215 = vmatprep.subr.mxu0 0.0
    %216 = vmatpush1.xpose.msra.mxu0 0.0
    %217 = vmatprep.subr.mxu0 0.0
    %218 = vmatpush1.xpose.msra.mxu0 0.0
    %219 = vmatprep.subr.mxu0 0.0
    %220 = vmatpush1.xpose.msra.mxu0 0.0
    %221 = vmatprep.subr.mxu0 0.0
    %222 = vmatpush1.xpose.msra.mxu0 0.0
    %223 = vmatprep.subr.mxu0 0.0
    %224 = vmatpush1.xpose.msra.mxu0 0.0
    %225 = vmatprep.subr.mxu0 0.0
    %226 = vmatpush1.xpose.msra.mxu0 0.0
    %227 = vmatprep.subr.mxu0 0.0
    %228 = vmatpush1.xpose.msra.mxu0 0.0
    %229 = vmatprep.subr.mxu0 0.0
    %230 = vmatpush1.xpose.msra.mxu0 0.0
    %231 = vmatprep.subr.mxu0 0.0
    %232 = vmatpush1.xpose.msra.mxu0 0.0
    %233 = vmatprep.subr.mxu0 0.0
    %234 = vmatpush1.xpose.msra.mxu0 0.0
    %235 = vmatprep.subr.mxu0 0.0
    %236 = vmatpush1.xpose.msra.mxu0 0.0
    %237 = vmatprep.subr.mxu0 0.0
    %238 = vmatpush1.xpose.msra.mxu0 0.0
    %239 = vmatprep.subr.mxu0 0.0
    %240 = vmatpush1.xpose.msra.mxu0 0.0
    %241 = vmatprep.subr.mxu0 0.0
    %242 = vmatpush1.xpose.msra.mxu0 0.0
    %243 = vmatprep.subr.mxu0 0.0
    %244 = vmatpush1.xpose.msra.mxu0 0.0
    %245 = vmatprep.subr.mxu0 0.0
    %246 = vmatpush1.xpose.msra.mxu0 0.0
    %247 = vmatprep.subr.mxu0 0.0
    %248 = vmatpush1.xpose.msra.mxu0 0.0
    %249 = vmatprep.subr.mxu0 0.0
    %250 = vmatpush1.xpose.msra.mxu0 0.0
    %251 = vmatprep.subr.mxu0 0.0
    %252 = vmatpush1.xpose.msra.mxu0 0.0
    %253 = vmatprep.mubr.f32.mxu0 0.0
    %254 = vmatmul.mubr.f32.gmra.mrb[0].mxu0 %v185
    %v255 = vpop.f32.mrb[0].mxu0
    %v256 = vadd.f32 0.0, %v255
    %v257 = vpop.f32.mrb[0].mxu0
    %258 = vdwg.mxu0
    %v259 = vmul.f32 %v256, 0.35355338
    %v260 = vlaneseq
    %v261 = vshrl.u32 %v260, 7
    %v262 = vsub.s32 0, %v261
    %v263 = vrot.slane %v180, %v262
    %v264 = vadd.f32 %v259, %v263
    %v265 = vsel %vm179, -1e+30, %v264
    %v266 = vsel %vm184, %v265, -inf
    %267 = vmax.xlane.f32.xlu0 %v266
    %v268 = vpop.xlane.xlu0 %267
    %v269 = vsub.f32 %v265, %v268
    %v270 = vmul.f32 %v269, 1.442695
    %v271 = vpow.pop %v270
    %v272 = vsel %vm184, %v271, 0.0
    %273 = vadd.xlane.f32.xlu0 %v272
    %v274 = vpop.xlane.xlu0 %273
    %275 = vrot.lane.b32.xlu0 %v167, 64
    %v276 = vpop.permute.xlu0 %275
    %v279 = vsel %vm184, %v271, 0
    %281 = vmatprep.subr.mxu0 0.0
    %282 = vmatpush1.msra.mxu0 %v276
    %283 = vmatprep.subr.mxu0 0.0
    %284 = vmatpush1.msra.mxu0 0.0
    %285 = vmatprep.subr.mxu0 0.0
    %286 = vmatpush1.msra.mxu0 0.0
    %287 = vmatprep.subr.mxu0 0.0
    %288 = vmatpush1.msra.mxu0 0.0
    %289 = vmatprep.subr.mxu0 0.0
    %290 = vmatpush1.msra.mxu0 0.0
    %291 = vmatprep.subr.mxu0 0.0
    %292 = vmatpush1.msra.mxu0 0.0
    %293 = vmatprep.subr.mxu0 0.0
    %294 = vmatpush1.msra.mxu0 0.0
    %295 = vmatprep.subr.mxu0 0.0
    %296 = vmatpush1.msra.mxu0 0.0
    %297 = vmatprep.subr.mxu0 0.0
    %298 = vmatpush1.msra.mxu0 0.0
    %299 = vmatprep.subr.mxu0 0.0
    %300 = vmatpush1.msra.mxu0 0.0
    %301 = vmatprep.subr.mxu0 0.0
    %302 = vmatpush1.msra.mxu0 0.0
    %303 = vmatprep.subr.mxu0 0.0
    %304 = vmatpush1.msra.mxu0 0.0
    %305 = vmatprep.subr.mxu0 0.0
    %306 = vmatpush1.msra.mxu0 0.0
    %307 = vmatprep.subr.mxu0 0.0
    %308 = vmatpush1.msra.mxu0 0.0
    %309 = vmatprep.subr.mxu0 0.0
    %310 = vmatpush1.msra.mxu0 0.0
    %311 = vmatprep.subr.mxu0 0.0
    %312 = vmatpush1.msra.mxu0 0.0
    %313 = vmatprep.subr.mxu0 0.0
    %314 = vmatpush1.msra.mxu0 0.0
    %315 = vmatprep.subr.mxu0 0.0
    %316 = vmatpush1.msra.mxu0 0.0
    %317 = vmatprep.subr.mxu0 0.0
    %318 = vmatpush1.msra.mxu0 0.0
    %319 = vmatprep.subr.mxu0 0.0
    %320 = vmatpush1.msra.mxu0 0.0
    %321 = vmatprep.subr.mxu0 0.0
    %322 = vmatpush1.msra.mxu0 0.0
    %323 = vmatprep.subr.mxu0 0.0
    %324 = vmatpush1.msra.mxu0 0.0
    %325 = vmatprep.subr.mxu0 0.0
    %326 = vmatpush1.msra.mxu0 0.0
    %327 = vmatprep.subr.mxu0 0.0
    %328 = vmatpush1.msra.mxu0 0.0
    %329 = vmatprep.subr.mxu0 0.0
    %330 = vmatpush1.msra.mxu0 0.0
    %331 = vmatprep.subr.mxu0 0.0
    %332 = vmatpush1.msra.mxu0 0.0
    %333 = vmatprep.subr.mxu0 0.0
    %334 = vmatpush1.msra.mxu0 0.0
    %335 = vmatprep.subr.mxu0 0.0
    %336 = vmatpush1.msra.mxu0 0.0
    %337 = vmatprep.subr.mxu0 0.0
    %338 = vmatpush1.msra.mxu0 0.0
    %339 = vmatprep.subr.mxu0 0.0
    %340 = vmatpush1.msra.mxu0 0.0
    %341 = vmatprep.subr.mxu0 0.0
    %342 = vmatpush1.msra.mxu0 0.0
    %343 = vmatprep.subr.mxu0 0.0
    %344 = vmatpush1.msra.mxu0 0.0
    %345 = vmatprep.mubr.f32.mxu0 0.0
    %346 = vmatmul.mubr.f32.gmra.mrb[0].mxu0 %v279
    %v347 = vpop.f32.mrb[0].mxu0
    %v348 = vadd.f32 0.0, %v347
    %v349 = vpop.f32.mrb[0].mxu0
    %350 = vdwg.mxu0
    %v351 = vrcp.pop %v274
    %v352 = vmul.f32 %v348, %v351
    %353 = vst.msk [vmem:[#allocation2] sm:$0xff] %vm184, %v352
    %v354 = vld [vmem:[#allocation8 + $0x1] sm:$0x1]
    %355 = vrot.lane.b32.xlu0 %v167, 120
    %v356 = vpop.permute.xlu0 %355
    %357 = vrot.lane.b32.xlu0 %v167, 88
    %v358 = vpop.permute.xlu0 %357
    %v359 = vsel %vm184, %v356, 0
    %v361 = vsel %vm184, %v358, 0
    %363 = vmatprep.subr.mxu0 0.0
    %364 = vmatpush1.xpose.msra.mxu0 %v361
    %365 = vmatprep.subr.mxu0 0.0
    %366 = vmatpush1.xpose.msra.mxu0 0.0
    %367 = vmatprep.subr.mxu0 0.0
    %368 = vmatpush1.xpose.msra.mxu0 0.0
    %369 = vmatprep.subr.mxu0 0.0
    %370 = vmatpush1.xpose.msra.mxu0 0.0
    %371 = vmatprep.subr.mxu0 0.0
    %372 = vmatpush1.xpose.msra.mxu0 0.0
    %373 = vmatprep.subr.mxu0 0.0
    %374 = vmatpush1.xpose.msra.mxu0 0.0
    %375 = vmatprep.subr.mxu0 0.0
    %376 = vmatpush1.xpose.msra.mxu0 0.0
    %377 = vmatprep.subr.mxu0 0.0
    %378 = vmatpush1.xpose.msra.mxu0 0.0
    %379 = vmatprep.subr.mxu0 0.0
    %380 = vmatpush1.xpose.msra.mxu0 0.0
    %381 = vmatprep.subr.mxu0 0.0
    %382 = vmatpush1.xpose.msra.mxu0 0.0
    %383 = vmatprep.subr.mxu0 0.0
    %384 = vmatpush1.xpose.msra.mxu0 0.0
    %385 = vmatprep.subr.mxu0 0.0
    %386 = vmatpush1.xpose.msra.mxu0 0.0
    %387 = vmatprep.subr.mxu0 0.0
    %388 = vmatpush1.xpose.msra.mxu0 0.0
    %389 = vmatprep.subr.mxu0 0.0
    %390 = vmatpush1.xpose.msra.mxu0 0.0
    %391 = vmatprep.subr.mxu0 0.0
    %392 = vmatpush1.xpose.msra.mxu0 0.0
    %393 = vmatprep.subr.mxu0 0.0
    %394 = vmatpush1.xpose.msra.mxu0 0.0
    %395 = vmatprep.subr.mxu0 0.0
    %396 = vmatpush1.xpose.msra.mxu0 0.0
    %397 = vmatprep.subr.mxu0 0.0
    %398 = vmatpush1.xpose.msra.mxu0 0.0
    %399 = vmatprep.subr.mxu0 0.0
    %400 = vmatpush1.xpose.msra.mxu0 0.0
    %401 = vmatprep.subr.mxu0 0.0
    %402 = vmatpush1.xpose.msra.mxu0 0.0
    %403 = vmatprep.subr.mxu0 0.0
    %404 = vmatpush1.xpose.msra.mxu0 0.0
    %405 = vmatprep.subr.mxu0 0.0
    %406 = vmatpush1.xpose.msra.mxu0 0.0
    %407 = vmatprep.subr.mxu0 0.0
    %408 = vmatpush1.xpose.msra.mxu0 0.0
    %409 = vmatprep.subr.mxu0 0.0
    %410 = vmatpush1.xpose.msra.mxu0 0.0
    %411 = vmatprep.subr.mxu0 0.0
    %412 = vmatpush1.xpose.msra.mxu0 0.0
    %413 = vmatprep.subr.mxu0 0.0
    %414 = vmatpush1.xpose.msra.mxu0 0.0
    %415 = vmatprep.subr.mxu0 0.0
    %416 = vmatpush1.xpose.msra.mxu0 0.0
    %417 = vmatprep.subr.mxu0 0.0
    %418 = vmatpush1.xpose.msra.mxu0 0.0
    %419 = vmatprep.subr.mxu0 0.0
    %420 = vmatpush1.xpose.msra.mxu0 0.0
    %421 = vmatprep.subr.mxu0 0.0
    %422 = vmatpush1.xpose.msra.mxu0 0.0
    %423 = vmatprep.subr.mxu0 0.0
    %424 = vmatpush1.xpose.msra.mxu0 0.0
    %425 = vmatprep.subr.mxu0 0.0
    %426 = vmatpush1.xpose.msra.mxu0 0.0
    %427 = vmatprep.mubr.f32.mxu0 0.0
    %428 = vmatmul.mubr.f32.gmra.mrb[0].mxu0 %v359
    %v429 = vpop.f32.mrb[0].mxu0
    %v430 = vadd.f32 0.0, %v429
    %v431 = vpop.f32.mrb[0].mxu0
    %432 = vdwg.mxu0
    %v433 = vmul.f32 %v430, 0.35355338
    %v434 = vlaneseq
    %v435 = vshrl.u32 %v434, 7
    %v436 = vsub.s32 0, %v435
    %v437 = vrot.slane %v354, %v436
    %v438 = vadd.f32 %v433, %v437
    %v439 = vsel %vm179, -1e+30, %v438
    %v440 = vsel %vm184, %v439, -inf
    %441 = vmax.xlane.f32.xlu0 %v440
    %v442 = vpop.xlane.xlu0 %441
    %v443 = vsub.f32 %v439, %v442
    %v444 = vmul.f32 %v443, 1.442695
    %v445 = vpow.pop %v444
    %v446 = vsel %vm184, %v445, 0.0
    %447 = vadd.xlane.f32.xlu0 %v446
    %v448 = vpop.xlane.xlu0 %447
    %449 = vrot.lane.b32.xlu0 %v167, 56
    %v450 = vpop.permute.xlu0 %449
    %v453 = vsel %vm184, %v445, 0
    %455 = vmatprep.subr.mxu0 0.0
    %456 = vmatpush1.msra.mxu0 %v450
    %457 = vmatprep.subr.mxu0 0.0
    %458 = vmatpush1.msra.mxu0 0.0
    %459 = vmatprep.subr.mxu0 0.0
    %460 = vmatpush1.msra.mxu0 0.0
    %461 = vmatprep.subr.mxu0 0.0
    %462 = vmatpush1.msra.mxu0 0.0
    %463 = vmatprep.subr.mxu0 0.0
    %464 = vmatpush1.msra.mxu0 0.0
    %465 = vmatprep.subr.mxu0 0.0
    %466 = vmatpush1.msra.mxu0 0.0
    %467 = vmatprep.subr.mxu0 0.0
    %468 = vmatpush1.msra.mxu0 0.0
    %469 = vmatprep.subr.mxu0 0.0
    %470 = vmatpush1.msra.mxu0 0.0
    %471 = vmatprep.subr.mxu0 0.0
    %472 = vmatpush1.msra.mxu0 0.0
    %473 = vmatprep.subr.mxu0 0.0
    %474 = vmatpush1.msra.mxu0 0.0
    %475 = vmatprep.subr.mxu0 0.0
    %476 = vmatpush1.msra.mxu0 0.0
    %477 = vmatprep.subr.mxu0 0.0
    %478 = vmatpush1.msra.mxu0 0.0
    %479 = vmatprep.subr.mxu0 0.0
    %480 = vmatpush1.msra.mxu0 0.0
    %481 = vmatprep.subr.mxu0 0.0
    %482 = vmatpush1.msra.mxu0 0.0
    %483 = vmatprep.subr.mxu0 0.0
    %484 = vmatpush1.msra.mxu0 0.0
    %485 = vmatprep.subr.mxu0 0.0
    %486 = vmatpush1.msra.mxu0 0.0
    %487 = vmatprep.subr.mxu0 0.0
    %488 = vmatpush1.msra.mxu0 0.0
    %489 = vmatprep.subr.mxu0 0.0
    %490 = vmatpush1.msra.mxu0 0.0
    %491 = vmatprep.subr.mxu0 0.0
    %492 = vmatpush1.msra.mxu0 0.0
    %493 = vmatprep.subr.mxu0 0.0
    %494 = vmatpush1.msra.mxu0 0.0
    %495 = vmatprep.subr.mxu0 0.0
    %496 = vmatpush1.msra.mxu0 0.0
    %497 = vmatprep.subr.mxu0 0.0
    %498 = vmatpush1.msra.mxu0 0.0
    %499 = vmatprep.subr.mxu0 0.0
    %500 = vmatpush1.msra.mxu0 0.0
    %501 = vmatprep.subr.mxu0 0.0
    %502 = vmatpush1.msra.mxu0 0.0
    %503 = vmatprep.subr.mxu0 0.0
    %504 = vmatpush1.msra.mxu0 0.0
    %505 = vmatprep.subr.mxu0 0.0
    %506 = vmatpush1.msra.mxu0 0.0
    %507 = vmatprep.subr.mxu0 0.0
    %508 = vmatpush1.msra.mxu0 0.0
    %509 = vmatprep.subr.mxu0 0.0
    %510 = vmatpush1.msra.mxu0 0.0
    %511 = vmatprep.subr.mxu0 0.0
    %512 = vmatpush1.msra.mxu0 0.0
    %513 = vmatprep.subr.mxu0 0.0
    %514 = vmatpush1.msra.mxu0 0.0
    %515 = vmatprep.subr.mxu0 0.0
    %516 = vmatpush1.msra.mxu0 0.0
    %517 = vmatprep.subr.mxu0 0.0
    %518 = vmatpush1.msra.mxu0 0.0
    %519 = vmatprep.mubr.f32.mxu0 0.0
    %520 = vmatmul.mubr.f32.gmra.mrb[0].mxu0 %v453
    %v521 = vpop.f32.mrb[0].mxu0
    %v522 = vadd.f32 0.0, %v521
    %v523 = vpop.f32.mrb[0].mxu0
    %524 = vdwg.mxu0
    %v525 = vrcp.pop %v448
    %v526 = vmul.f32 %v522, %v525
    %528 = vrot.lane.b32.xlu0 %v526, 8
    %v529 = vpop.permute.xlu0 %528
    %vm531 = vcmask 130112
    %532 = vst.msk [vmem:[#allocation2] sm:$0xff] %vm531, %v529
    %v533 = vld [vmem:[#allocation8 + $0x2] sm:$0x1]
    %534 = vrot.lane.b32.xlu0 %v167, 112
    %v535 = vpop.permute.xlu0 %534
    %536 = vrot.lane.b32.xlu0 %v167, 80
    %v537 = vpop.permute.xlu0 %536
    %v538 = vsel %vm184, %v535, 0
    %v540 = vsel %vm184, %v537, 0
    %542 = vmatprep.subr.mxu0 0.0
    %543 = vmatpush1.xpose.msra.mxu0 %v540
    %544 = vmatprep.subr.mxu0 0.0
    %545 = vmatpush1.xpose.msra.mxu0 0.0
    %546 = vmatprep.subr.mxu0 0.0
    %547 = vmatpush1.xpose.msra.mxu0 0.0
    %548 = vmatprep.subr.mxu0 0.0
    %549 = vmatpush1.xpose.msra.mxu0 0.0
    %550 = vmatprep.subr.mxu0 0.0
    %551 = vmatpush1.xpose.msra.mxu0 0.0
    %552 = vmatprep.subr.mxu0 0.0
    %553 = vmatpush1.xpose.msra.mxu0 0.0
    %554 = vmatprep.subr.mxu0 0.0
    %555 = vmatpush1.xpose.msra.mxu0 0.0
    %556 = vmatprep.subr.mxu0 0.0
    %557 = vmatpush1.xpose.msra.mxu0 0.0
    %558 = vmatprep.subr.mxu0 0.0
    %559 = vmatpush1.xpose.msra.mxu0 0.0
    %560 = vmatprep.subr.mxu0 0.0
    %561 = vmatpush1.xpose.msra.mxu0 0.0
    %562 = vmatprep.subr.mxu0 0.0
    %563 = vmatpush1.xpose.msra.mxu0 0.0
    %564 = vmatprep.subr.mxu0 0.0
    %565 = vmatpush1.xpose.msra.mxu0 0.0
    %566 = vmatprep.subr.mxu0 0.0
    %567 = vmatpush1.xpose.msra.mxu0 0.0
    %568 = vmatprep.subr.mxu0 0.0
    %569 = vmatpush1.xpose.msra.mxu0 0.0
    %570 = vmatprep.subr.mxu0 0.0
    %571 = vmatpush1.xpose.msra.mxu0 0.0
    %572 = vmatprep.subr.mxu0 0.0
    %573 = vmatpush1.xpose.msra.mxu0 0.0
    %574 = vmatprep.subr.mxu0 0.0
    %575 = vmatpush1.xpose.msra.mxu0 0.0
    %576 = vmatprep.subr.mxu0 0.0
    %577 = vmatpush1.xpose.msra.mxu0 0.0
    %578 = vmatprep.subr.mxu0 0.0
    %579 = vmatpush1.xpose.msra.mxu0 0.0
    %580 = vmatprep.subr.mxu0 0.0
    %581 = vmatpush1.xpose.msra.mxu0 0.0
    %582 = vmatprep.subr.mxu0 0.0
    %583 = vmatpush1.xpose.msra.mxu0 0.0
    %584 = vmatprep.subr.mxu0 0.0
    %585 = vmatpush1.xpose.msra.mxu0 0.0
    %586 = vmatprep.subr.mxu0 0.0
    %587 = vmatpush1.xpose.msra.mxu0 0.0
    %588 = vmatprep.subr.mxu0 0.0
    %589 = vmatpush1.xpose.msra.mxu0 0.0
    %590 = vmatprep.subr.mxu0 0.0
    %591 = vmatpush1.xpose.msra.mxu0 0.0
    %592 = vmatprep.subr.mxu0 0.0
    %593 = vmatpush1.xpose.msra.mxu0 0.0
    %594 = vmatprep.subr.mxu0 0.0
    %595 = vmatpush1.xpose.msra.mxu0 0.0
    %596 = vmatprep.subr.mxu0 0.0
    %597 = vmatpush1.xpose.msra.mxu0 0.0
    %598 = vmatprep.subr.mxu0 0.0
    %599 = vmatpush1.xpose.msra.mxu0 0.0
    %600 = vmatprep.subr.mxu0 0.0
    %601 = vmatpush1.xpose.msra.mxu0 0.0
    %602 = vmatprep.subr.mxu0 0.0
    %603 = vmatpush1.xpose.msra.mxu0 0.0
    %604 = vmatprep.subr.mxu0 0.0
    %605 = vmatpush1.xpose.msra.mxu0 0.0
    %606 = vmatprep.mubr.f32.mxu0 0.0
    %607 = vmatmul.mubr.f32.gmra.mrb[0].mxu0 %v538
    %v608 = vpop.f32.mrb[0].mxu0
    %v609 = vadd.f32 0.0, %v608
    %v610 = vpop.f32.mrb[0].mxu0
    %611 = vdwg.mxu0
    %v612 = vmul.f32 %v609, 0.35355338
    %v613 = vlaneseq
    %v614 = vshrl.u32 %v613, 7
    %v615 = vsub.s32 0, %v614
    %v616 = vrot.slane %v533, %v615
    %v617 = vadd.f32 %v612, %v616
    %v618 = vsel %vm179, -1e+30, %v617
    %v619 = vsel %vm184, %v618, -inf
    %620 = vmax.xlane.f32.xlu0 %v619
    %v621 = vpop.xlane.xlu0 %620
    %v622 = vsub.f32 %v618, %v621
    %v623 = vmul.f32 %v622, 1.442695
    %v624 = vpow.pop %v623
    %v625 = vsel %vm184, %v624, 0.0
    %626 = vadd.xlane.f32.xlu0 %v625
    %v627 = vpop.xlane.xlu0 %626
    %628 = vrot.lane.b32.xlu0 %v167, 48
    %v629 = vpop.permute.xlu0 %628
    %v632 = vsel %vm184, %v624, 0
    %634 = vmatprep.subr.mxu0 0.0
    %635 = vmatpush1.msra.mxu0 %v629
    %636 = vmatprep.subr.mxu0 0.0
    %637 = vmatpush1.msra.mxu0 0.0
    %638 = vmatprep.subr.mxu0 0.0
    %639 = vmatpush1.msra.mxu0 0.0
    %640 = vmatprep.subr.mxu0 0.0
    %641 = vmatpush1.msra.mxu0 0.0
    %642 = vmatprep.subr.mxu0 0.0
    %643 = vmatpush1.msra.mxu0 0.0
    %644 = vmatprep.subr.mxu0 0.0
    %645 = vmatpush1.msra.mxu0 0.0
    %646 = vmatprep.subr.mxu0 0.0
    %647 = vmatpush1.msra.mxu0 0.0
    %648 = vmatprep.subr.mxu0 0.0
    %649 = vmatpush1.msra.mxu0 0.0
    %650 = vmatprep.subr.mxu0 0.0
    %651 = vmatpush1.msra.mxu0 0.0
    %652 = vmatprep.subr.mxu0 0.0
    %653 = vmatpush1.msra.mxu0 0.0
    %654 = vmatprep.subr.mxu0 0.0
    %655 = vmatpush1.msra.mxu0 0.0
    %656 = vmatprep.subr.mxu0 0.0
    %657 = vmatpush1.msra.mxu0 0.0
    %658 = vmatprep.subr.mxu0 0.0
    %659 = vmatpush1.msra.mxu0 0.0
    %660 = vmatprep.subr.mxu0 0.0
    %661 = vmatpush1.msra.mxu0 0.0
    %662 = vmatprep.subr.mxu0 0.0
    %663 = vmatpush1.msra.mxu0 0.0
    %664 = vmatprep.subr.mxu0 0.0
    %665 = vmatpush1.msra.mxu0 0.0
    %666 = vmatprep.subr.mxu0 0.0
    %667 = vmatpush1.msra.mxu0 0.0
    %668 = vmatprep.subr.mxu0 0.0
    %669 = vmatpush1.msra.mxu0 0.0
    %670 = vmatprep.subr.mxu0 0.0
    %671 = vmatpush1.msra.mxu0 0.0
    %672 = vmatprep.subr.mxu0 0.0
    %673 = vmatpush1.msra.mxu0 0.0
    %674 = vmatprep.subr.mxu0 0.0
    %675 = vmatpush1.msra.mxu0 0.0
    %676 = vmatprep.subr.mxu0 0.0
    %677 = vmatpush1.msra.mxu0 0.0
    %678 = vmatprep.subr.mxu0 0.0
    %679 = vmatpush1.msra.mxu0 0.0
    %680 = vmatprep.subr.mxu0 0.0
    %681 = vmatpush1.msra.mxu0 0.0
    %682 = vmatprep.subr.mxu0 0.0
    %683 = vmatpush1.msra.mxu0 0.0
    %684 = vmatprep.subr.mxu0 0.0
    %685 = vmatpush1.msra.mxu0 0.0
    %686 = vmatprep.subr.mxu0 0.0
    %687 = vmatpush1.msra.mxu0 0.0
    %688 = vmatprep.subr.mxu0 0.0
    %689 = vmatpush1.msra.mxu0 0.0
    %690 = vmatprep.subr.mxu0 0.0
    %691 = vmatpush1.msra.mxu0 0.0
    %692 = vmatprep.subr.mxu0 0.0
    %693 = vmatpush1.msra.mxu0 0.0
    %694 = vmatprep.subr.mxu0 0.0
    %695 = vmatpush1.msra.mxu0 0.0
    %696 = vmatprep.subr.mxu0 0.0
    %697 = vmatpush1.msra.mxu0 0.0
    %698 = vmatprep.mubr.f32.mxu0 0.0
    %699 = vmatmul.mubr.f32.gmra.mrb[0].mxu0 %v632
    %v700 = vpop.f32.mrb[0].mxu0
    %v701 = vadd.f32 0.0, %v700
    %v702 = vpop.f32.mrb[0].mxu0
    %703 = vdwg.mxu0
    %v704 = vrcp.pop %v627
    %v705 = vmul.f32 %v701, %v704
    %707 = vrot.lane.b32.xlu0 %v705, 16
    %v708 = vpop.permute.xlu0 %707
    %vm710 = vcmask 195712
    %711 = vst.msk [vmem:[#allocation2] sm:$0xff] %vm710, %v708
    %v712 = vld [vmem:[#allocation8 + $0x3] sm:$0x1]
    %713 = vrot.lane.b32.xlu0 %v167, 104
    %v714 = vpop.permute.xlu0 %713
    %715 = vrot.lane.b32.xlu0 %v167, 72
    %v716 = vpop.permute.xlu0 %715
    %v717 = vsel %vm184, %v714, 0
    %v719 = vsel %vm184, %v716, 0
    %721 = vmatprep.subr.mxu0 0.0
    %722 = vmatpush1.xpose.msra.mxu0 %v719
    %723 = vmatprep.subr.mxu0 0.0
    %724 = vmatpush1.xpose.msra.mxu0 0.0
    %725 = vmatprep.subr.mxu0 0.0
    %726 = vmatpush1.xpose.msra.mxu0 0.0
    %727 = vmatprep.subr.mxu0 0.0
    %728 = vmatpush1.xpose.msra.mxu0 0.0
    %729 = vmatprep.subr.mxu0 0.0
    %730 = vmatpush1.xpose.msra.mxu0 0.0
    %731 = vmatprep.subr.mxu0 0.0
    %732 = vmatpush1.xpose.msra.mxu0 0.0
    %733 = vmatprep.subr.mxu0 0.0
    %734 = vmatpush1.xpose.msra.mxu0 0.0
    %735 = vmatprep.subr.mxu0 0.0
    %736 = vmatpush1.xpose.msra.mxu0 0.0
    %737 = vmatprep.subr.mxu0 0.0
    %738 = vmatpush1.xpose.msra.mxu0 0.0
    %739 = vmatprep.subr.mxu0 0.0
    %740 = vmatpush1.xpose.msra.mxu0 0.0
    %741 = vmatprep.subr.mxu0 0.0
    %742 = vmatpush1.xpose.msra.mxu0 0.0
    %743 = vmatprep.subr.mxu0 0.0
    %744 = vmatpush1.xpose.msra.mxu0 0.0
    %745 = vmatprep.subr.mxu0 0.0
    %746 = vmatpush1.xpose.msra.mxu0 0.0
    %747 = vmatprep.subr.mxu0 0.0
    %748 = vmatpush1.xpose.msra.mxu0 0.0
    %749 = vmatprep.subr.mxu0 0.0
    %750 = vmatpush1.xpose.msra.mxu0 0.0
    %751 = vmatprep.subr.mxu0 0.0
    %752 = vmatpush1.xpose.msra.mxu0 0.0
    %753 = vmatprep.subr.mxu0 0.0
    %754 = vmatpush1.xpose.msra.mxu0 0.0
    %755 = vmatprep.subr.mxu0 0.0
    %756 = vmatpush1.xpose.msra.mxu0 0.0
    %757 = vmatprep.subr.mxu0 0.0
    %758 = vmatpush1.xpose.msra.mxu0 0.0
    %759 = vmatprep.subr.mxu0 0.0
    %760 = vmatpush1.xpose.msra.mxu0 0.0
    %761 = vmatprep.subr.mxu0 0.0
    %762 = vmatpush1.xpose.msra.mxu0 0.0
    %763 = vmatprep.subr.mxu0 0.0
    %764 = vmatpush1.xpose.msra.mxu0 0.0
    %765 = vmatprep.subr.mxu0 0.0
    %766 = vmatpush1.xpose.msra.mxu0 0.0
    %767 = vmatprep.subr.mxu0 0.0
    %768 = vmatpush1.xpose.msra.mxu0 0.0
    %769 = vmatprep.subr.mxu0 0.0
    %770 = vmatpush1.xpose.msra.mxu0 0.0
    %771 = vmatprep.subr.mxu0 0.0
    %772 = vmatpush1.xpose.msra.mxu0 0.0
    %773 = vmatprep.subr.mxu0 0.0
    %774 = vmatpush1.xpose.msra.mxu0 0.0
    %775 = vmatprep.subr.mxu0 0.0
    %776 = vmatpush1.xpose.msra.mxu0 0.0
    %777 = vmatprep.subr.mxu0 0.0
    %778 = vmatpush1.xpose.msra.mxu0 0.0
    %779 = vmatprep.subr.mxu0 0.0
    %780 = vmatpush1.xpose.msra.mxu0 0.0
    %781 = vmatprep.subr.mxu0 0.0
    %782 = vmatpush1.xpose.msra.mxu0 0.0
    %783 = vmatprep.subr.mxu0 0.0
    %784 = vmatpush1.xpose.msra.mxu0 0.0
    %785 = vmatprep.mubr.f32.mxu0 0.0
    %786 = vmatmul.mubr.f32.gmra.mrb[0].mxu0 %v717
    %v787 = vpop.f32.mrb[0].mxu0
    %v788 = vadd.f32 0.0, %v787
    %v789 = vpop.f32.mrb[0].mxu0
    %790 = vdwg.mxu0
    %v791 = vmul.f32 %v788, 0.35355338
    %v792 = vlaneseq
    %v793 = vshrl.u32 %v792, 7
    %v794 = vsub.s32 0, %v793
    %v795 = vrot.slane %v712, %v794
    %v796 = vadd.f32 %v791, %v795
    %v797 = vsel %vm179, -1e+30, %v796
    %v798 = vsel %vm184, %v797, -inf
    %799 = vmax.xlane.f32.xlu0 %v798
    %v800 = vpop.xlane.xlu0 %799
    %v801 = vsub.f32 %v797, %v800
    %v802 = vmul.f32 %v801, 1.442695
    %v803 = vpow.pop %v802
    %v804 = vsel %vm184, %v803, 0.0
    %805 = vadd.xlane.f32.xlu0 %v804
    %v806 = vpop.xlane.xlu0 %805
    %807 = vrot.lane.b32.xlu0 %v167, 40
    %v808 = vpop.permute.xlu0 %807
    %v811 = vsel %vm184, %v803, 0
    %813 = vmatprep.subr.mxu0 0.0
    %814 = vmatpush1.msra.mxu0 %v808
    %815 = vmatprep.subr.mxu0 0.0
    %816 = vmatpush1.msra.mxu0 0.0
    %817 = vmatprep.subr.mxu0 0.0
    %818 = vmatpush1.msra.mxu0 0.0
    %819 = vmatprep.subr.mxu0 0.0
    %820 = vmatpush1.msra.mxu0 0.0
    %821 = vmatprep.subr.mxu0 0.0
    %822 = vmatpush1.msra.mxu0 0.0
    %823 = vmatprep.subr.mxu0 0.0
    %824 = vmatpush1.msra.mxu0 0.0
    %825 = vmatprep.subr.mxu0 0.0
    %826 = vmatpush1.msra.mxu0 0.0
    %827 = vmatprep.subr.mxu0 0.0
    %828 = vmatpush1.msra.mxu0 0.0
    %829 = vmatprep.subr.mxu0 0.0
    %830 = vmatpush1.msra.mxu0 0.0
    %831 = vmatprep.subr.mxu0 0.0
    %832 = vmatpush1.msra.mxu0 0.0
    %833 = vmatprep.subr.mxu0 0.0
    %834 = vmatpush1.msra.mxu0 0.0
    %835 = vmatprep.subr.mxu0 0.0
    %836 = vmatpush1.msra.mxu0 0.0
    %837 = vmatprep.subr.mxu0 0.0
    %838 = vmatpush1.msra.mxu0 0.0
    %839 = vmatprep.subr.mxu0 0.0
    %840 = vmatpush1.msra.mxu0 0.0
    %841 = vmatprep.subr.mxu0 0.0
    %842 = vmatpush1.msra.mxu0 0.0
    %843 = vmatprep.subr.mxu0 0.0
    %844 = vmatpush1.msra.mxu0 0.0
    %845 = vmatprep.subr.mxu0 0.0
    %846 = vmatpush1.msra.mxu0 0.0
    %847 = vmatprep.subr.mxu0 0.0
    %848 = vmatpush1.msra.mxu0 0.0
    %849 = vmatprep.subr.mxu0 0.0
    %850 = vmatpush1.msra.mxu0 0.0
    %851 = vmatprep.subr.mxu0 0.0
    %852 = vmatpush1.msra.mxu0 0.0
    %853 = vmatprep.subr.mxu0 0.0
    %854 = vmatpush1.msra.mxu0 0.0
    %855 = vmatprep.subr.mxu0 0.0
    %856 = vmatpush1.msra.mxu0 0.0
    %857 = vmatprep.subr.mxu0 0.0
    %858 = vmatpush1.msra.mxu0 0.0
    %859 = vmatprep.subr.mxu0 0.0
    %860 = vmatpush1.msra.mxu0 0.0
    %861 = vmatprep.subr.mxu0 0.0
    %862 = vmatpush1.msra.mxu0 0.0
    %863 = vmatprep.subr.mxu0 0.0
    %864 = vmatpush1.msra.mxu0 0.0
    %865 = vmatprep.subr.mxu0 0.0
    %866 = vmatpush1.msra.mxu0 0.0
    %867 = vmatprep.subr.mxu0 0.0
    %868 = vmatpush1.msra.mxu0 0.0
    %869 = vmatprep.subr.mxu0 0.0
    %870 = vmatpush1.msra.mxu0 0.0
    %871 = vmatprep.subr.mxu0 0.0
    %872 = vmatpush1.msra.mxu0 0.0
    %873 = vmatprep.subr.mxu0 0.0
    %874 = vmatpush1.msra.mxu0 0.0
    %875 = vmatprep.subr.mxu0 0.0
    %876 = vmatpush1.msra.mxu0 0.0
    %877 = vmatprep.mubr.f32.mxu0 0.0
    %878 = vmatmul.mubr.f32.gmra.mrb[0].mxu0 %v811
    %v879 = vpop.f32.mrb[0].mxu0
    %v880 = vadd.f32 0.0, %v879
    %v881 = vpop.f32.mrb[0].mxu0
    %882 = vdwg.mxu0
    %v883 = vrcp.pop %v806
    %v884 = vmul.f32 %v880, %v883
    %886 = vrot.lane.b32.xlu0 %v884, 24
    %v887 = vpop.permute.xlu0 %886
    %vm889 = vcmask 261312
    %890 = vst.msk [vmem:[#allocation2] sm:$0xff] %vm889, %v887
    %v891 = vld [vmem:[#allocation8 + $0x4] sm:$0x1]
    %893 = vrot.lane.b32.xlu0 %v172, 96
    %v894 = vpop.permute.xlu0 %893
    %v895 = vsel %vm184, %v172, 0
    %v897 = vsel %vm184, %v894, 0
    %899 = vmatprep.subr.mxu0 0.0
    %900 = vmatpush1.xpose.msra.mxu0 %v897
    %901 = vmatprep.subr.mxu0 0.0
    %902 = vmatpush1.xpose.msra.mxu0 0.0
    %903 = vmatprep.subr.mxu0 0.0
    %904 = vmatpush1.xpose.msra.mxu0 0.0
    %905 = vmatprep.subr.mxu0 0.0
    %906 = vmatpush1.xpose.msra.mxu0 0.0
    %907 = vmatprep.subr.mxu0 0.0
    %908 = vmatpush1.xpose.msra.mxu0 0.0
    %909 = vmatprep.subr.mxu0 0.0
    %910 = vmatpush1.xpose.msra.mxu0 0.0
    %911 = vmatprep.subr.mxu0 0.0
    %912 = vmatpush1.xpose.msra.mxu0 0.0
    %913 = vmatprep.subr.mxu0 0.0
    %914 = vmatpush1.xpose.msra.mxu0 0.0
    %915 = vmatprep.subr.mxu0 0.0
    %916 = vmatpush1.xpose.msra.mxu0 0.0
    %917 = vmatprep.subr.mxu0 0.0
    %918 = vmatpush1.xpose.msra.mxu0 0.0
    %919 = vmatprep.subr.mxu0 0.0
    %920 = vmatpush1.xpose.msra.mxu0 0.0
    %921 = vmatprep.subr.mxu0 0.0
    %922 = vmatpush1.xpose.msra.mxu0 0.0
    %923 = vmatprep.subr.mxu0 0.0
    %924 = vmatpush1.xpose.msra.mxu0 0.0
    %925 = vmatprep.subr.mxu0 0.0
    %926 = vmatpush1.xpose.msra.mxu0 0.0
    %927 = vmatprep.subr.mxu0 0.0
    %928 = vmatpush1.xpose.msra.mxu0 0.0
    %929 = vmatprep.subr.mxu0 0.0
    %930 = vmatpush1.xpose.msra.mxu0 0.0
    %931 = vmatprep.subr.mxu0 0.0
    %932 = vmatpush1.xpose.msra.mxu0 0.0
    %933 = vmatprep.subr.mxu0 0.0
    %934 = vmatpush1.xpose.msra.mxu0 0.0
    %935 = vmatprep.subr.mxu0 0.0
    %936 = vmatpush1.xpose.msra.mxu0 0.0
    %937 = vmatprep.subr.mxu0 0.0
    %938 = vmatpush1.xpose.msra.mxu0 0.0
    %939 = vmatprep.subr.mxu0 0.0
    %940 = vmatpush1.xpose.msra.mxu0 0.0
    %941 = vmatprep.subr.mxu0 0.0
    %942 = vmatpush1.xpose.msra.mxu0 0.0
    %943 = vmatprep.subr.mxu0 0.0
    %944 = vmatpush1.xpose.msra.mxu0 0.0
    %945 = vmatprep.subr.mxu0 0.0
    %946 = vmatpush1.xpose.msra.mxu0 0.0
    %947 = vmatprep.subr.mxu0 0.0
    %948 = vmatpush1.xpose.msra.mxu0 0.0
    %949 = vmatprep.subr.mxu0 0.0
    %950 = vmatpush1.xpose.msra.mxu0 0.0
    %951 = vmatprep.subr.mxu0 0.0
    %952 = vmatpush1.xpose.msra.mxu0 0.0
    %953 = vmatprep.subr.mxu0 0.0
    %954 = vmatpush1.xpose.msra.mxu0 0.0
    %955 = vmatprep.subr.mxu0 0.0
    %956 = vmatpush1.xpose.msra.mxu0 0.0
    %957 = vmatprep.subr.mxu0 0.0
    %958 = vmatpush1.xpose.msra.mxu0 0.0
    %959 = vmatprep.subr.mxu0 0.0
    %960 = vmatpush1.xpose.msra.mxu0 0.0
    %961 = vmatprep.subr.mxu0 0.0
    %962 = vmatpush1.xpose.msra.mxu0 0.0
    %963 = vmatprep.mubr.f32.mxu0 0.0
    %964 = vmatmul.mubr.f32.gmra.mrb[0].mxu0 %v895
    %v965 = vpop.f32.mrb[0].mxu0
    %v966 = vadd.f32 0.0, %v965
    %v967 = vpop.f32.mrb[0].mxu0
    %968 = vdwg.mxu0
    %v969 = vmul.f32 %v966, 0.35355338
    %v970 = vlaneseq
    %v971 = vshrl.u32 %v970, 7
    %v972 = vsub.s32 0, %v971
    %v973 = vrot.slane %v891, %v972
    %v974 = vadd.f32 %v969, %v973
    %v975 = vsel %vm179, -1e+30, %v974
    %v976 = vsel %vm184, %v975, -inf
    %977 = vmax.xlane.f32.xlu0 %v976
    %v978 = vpop.xlane.xlu0 %977
    %v979 = vsub.f32 %v975, %v978
    %v980 = vmul.f32 %v979, 1.442695
    %v981 = vpow.pop %v980
    %v982 = vsel %vm184, %v981, 0.0
    %983 = vadd.xlane.f32.xlu0 %v982
    %v984 = vpop.xlane.xlu0 %983
    %985 = vrot.lane.b32.xlu0 %v172, 64
    %v986 = vpop.permute.xlu0 %985
    %v989 = vsel %vm184, %v981, 0
    %991 = vmatprep.subr.mxu0 0.0
    %992 = vmatpush1.msra.mxu0 %v986
    %993 = vmatprep.subr.mxu0 0.0
    %994 = vmatpush1.msra.mxu0 0.0
    %995 = vmatprep.subr.mxu0 0.0
    %996 = vmatpush1.msra.mxu0 0.0
    %997 = vmatprep.subr.mxu0 0.0
    %998 = vmatpush1.msra.mxu0 0.0
    %999 = vmatprep.subr.mxu0 0.0
    %1000 = vmatpush1.msra.mxu0 0.0
    %1001 = vmatprep.subr.mxu0 0.0
    %1002 = vmatpush1.msra.mxu0 0.0
    %1003 = vmatprep.subr.mxu0 0.0
    %1004 = vmatpush1.msra.mxu0 0.0
    %1005 = vmatprep.subr.mxu0 0.0
    %1006 = vmatpush1.msra.mxu0 0.0
    %1007 = vmatprep.subr.mxu0 0.0
    %1008 = vmatpush1.msra.mxu0 0.0
    %1009 = vmatprep.subr.mxu0 0.0
    %1010 = vmatpush1.msra.mxu0 0.0
    %1011 = vmatprep.subr.mxu0 0.0
    %1012 = vmatpush1.msra.mxu0 0.0
    %1013 = vmatprep.subr.mxu0 0.0
    %1014 = vmatpush1.msra.mxu0 0.0
    %1015 = vmatprep.subr.mxu0 0.0
    %1016 = vmatpush1.msra.mxu0 0.0
    %1017 = vmatprep.subr.mxu0 0.0
    %1018 = vmatpush1.msra.mxu0 0.0
    %1019 = vmatprep.subr.mxu0 0.0
    %1020 = vmatpush1.msra.mxu0 0.0
    %1021 = vmatprep.subr.mxu0 0.0
    %1022 = vmatpush1.msra.mxu0 0.0
    %1023 = vmatprep.subr.mxu0 0.0
    %1024 = vmatpush1.msra.mxu0 0.0
    %1025 = vmatprep.subr.mxu0 0.0
    %1026 = vmatpush1.msra.mxu0 0.0
    %1027 = vmatprep.subr.mxu0 0.0
    %1028 = vmatpush1.msra.mxu0 0.0
    %1029 = vmatprep.subr.mxu0 0.0
    %1030 = vmatpush1.msra.mxu0 0.0
    %1031 = vmatprep.subr.mxu0 0.0
    %1032 = vmatpush1.msra.mxu0 0.0
    %1033 = vmatprep.subr.mxu0 0.0
    %1034 = vmatpush1.msra.mxu0 0.0
    %1035 = vmatprep.subr.mxu0 0.0
    %1036 = vmatpush1.msra.mxu0 0.0
    %1037 = vmatprep.subr.mxu0 0.0
    %1038 = vmatpush1.msra.mxu0 0.0
    %1039 = vmatprep.subr.mxu0 0.0
    %1040 = vmatpush1.msra.mxu0 0.0
    %1041 = vmatprep.subr.mxu0 0.0
    %1042 = vmatpush1.msra.mxu0 0.0
    %1043 = vmatprep.subr.mxu0 0.0
    %1044 = vmatpush1.msra.mxu0 0.0
    %1045 = vmatprep.subr.mxu0 0.0
    %1046 = vmatpush1.msra.mxu0 0.0
    %1047 = vmatprep.subr.mxu0 0.0
    %1048 = vmatpush1.msra.mxu0 0.0
    %1049 = vmatprep.subr.mxu0 0.0
    %1050 = vmatpush1.msra.mxu0 0.0
    %1051 = vmatprep.subr.mxu0 0.0
    %1052 = vmatpush1.msra.mxu0 0.0
    %1053 = vmatprep.subr.mxu0 0.0
    %1054 = vmatpush1.msra.mxu0 0.0
    %1055 = vmatprep.mubr.f32.mxu0 0.0
    %1056 = vmatmul.mubr.f32.gmra.mrb[0].mxu0 %v989
    %v1057 = vpop.f32.mrb[0].mxu0
    %v1058 = vadd.f32 0.0, %v1057
    %v1059 = vpop.f32.mrb[0].mxu0
    %1060 = vdwg.mxu0
    %v1061 = vrcp.pop %v984
    %v1062 = vmul.f32 %v1058, %v1061
    %1063 = vst.msk [vmem:[#allocation2 + $0x8] sm:$0xff] %vm184, %v1062
    %v1064 = vld [vmem:[#allocation8 + $0x5] sm:$0x1]
    %1065 = vrot.lane.b32.xlu0 %v172, 120
    %v1066 = vpop.permute.xlu0 %1065
    %1067 = vrot.lane.b32.xlu0 %v172, 88
    %v1068 = vpop.permute.xlu0 %1067
    %v1069 = vsel %vm184, %v1066, 0
    %v1071 = vsel %vm184, %v1068, 0
    %1073 = vmatprep.subr.mxu0 0.0
    %1074 = vmatpush1.xpose.msra.mxu0 %v1071
    %1075 = vmatprep.subr.mxu0 0.0
    %1076 = vmatpush1.xpose.msra.mxu0 0.0
    %1077 = vmatprep.subr.mxu0 0.0
    %1078 = vmatpush1.xpose.msra.mxu0 0.0
    %1079 = vmatprep.subr.mxu0 0.0
    %1080 = vmatpush1.xpose.msra.mxu0 0.0
    %1081 = vmatprep.subr.mxu0 0.0
    %1082 = vmatpush1.xpose.msra.mxu0 0.0
    %1083 = vmatprep.subr.mxu0 0.0
    %1084 = vmatpush1.xpose.msra.mxu0 0.0
    %1085 = vmatprep.subr.mxu0 0.0
    %1086 = vmatpush1.xpose.msra.mxu0 0.0
    %1087 = vmatprep.subr.mxu0 0.0
    %1088 = vmatpush1.xpose.msra.mxu0 0.0
    %1089 = vmatprep.subr.mxu0 0.0
    %1090 = vmatpush1.xpose.msra.mxu0 0.0
    %1091 = vmatprep.subr.mxu0 0.0
    %1092 = vmatpush1.xpose.msra.mxu0 0.0
    %1093 = vmatprep.subr.mxu0 0.0
    %1094 = vmatpush1.xpose.msra.mxu0 0.0
    %1095 = vmatprep.subr.mxu0 0.0
    %1096 = vmatpush1.xpose.msra.mxu0 0.0
    %1097 = vmatprep.subr.mxu0 0.0
    %1098 = vmatpush1.xpose.msra.mxu0 0.0
    %1099 = vmatprep.subr.mxu0 0.0
    %1100 = vmatpush1.xpose.msra.mxu0 0.0
    %1101 = vmatprep.subr.mxu0 0.0
    %1102 = vmatpush1.xpose.msra.mxu0 0.0
    %1103 = vmatprep.subr.mxu0 0.0
    %1104 = vmatpush1.xpose.msra.mxu0 0.0
    %1105 = vmatprep.subr.mxu0 0.0
    %1106 = vmatpush1.xpose.msra.mxu0 0.0
    %1107 = vmatprep.subr.mxu0 0.0
    %1108 = vmatpush1.xpose.msra.mxu0 0.0
    %1109 = vmatprep.subr.mxu0 0.0
    %1110 = vmatpush1.xpose.msra.mxu0 0.0
    %1111 = vmatprep.subr.mxu0 0.0
    %1112 = vmatpush1.xpose.msra.mxu0 0.0
    %1113 = vmatprep.subr.mxu0 0.0
    %1114 = vmatpush1.xpose.msra.mxu0 0.0
    %1115 = vmatprep.subr.mxu0 0.0
    %1116 = vmatpush1.xpose.msra.mxu0 0.0
    %1117 = vmatprep.subr.mxu0 0.0
    %1118 = vmatpush1.xpose.msra.mxu0 0.0
    %1119 = vmatprep.subr.mxu0 0.0
    %1120 = vmatpush1.xpose.msra.mxu0 0.0
    %1121 = vmatprep.subr.mxu0 0.0
    %1122 = vmatpush1.xpose.msra.mxu0 0.0
    %1123 = vmatprep.subr.mxu0 0.0
    %1124 = vmatpush1.xpose.msra.mxu0 0.0
    %1125 = vmatprep.subr.mxu0 0.0
    %1126 = vmatpush1.xpose.msra.mxu0 0.0
    %1127 = vmatprep.subr.mxu0 0.0
    %1128 = vmatpush1.xpose.msra.mxu0 0.0
    %1129 = vmatprep.subr.mxu0 0.0
    %1130 = vmatpush1.xpose.msra.mxu0 0.0
    %1131 = vmatprep.subr.mxu0 0.0
    %1132 = vmatpush1.xpose.msra.mxu0 0.0
    %1133 = vmatprep.subr.mxu0 0.0
    %1134 = vmatpush1.xpose.msra.mxu0 0.0
    %1135 = vmatprep.subr.mxu0 0.0
    %1136 = vmatpush1.xpose.msra.mxu0 0.0
    %1137 = vmatprep.mubr.f32.mxu0 0.0
    %1138 = vmatmul.mubr.f32.gmra.mrb[0].mxu0 %v1069
    %v1139 = vpop.f32.mrb[0].mxu0
    %v1140 = vadd.f32 0.0, %v1139
    %v1141 = vpop.f32.mrb[0].mxu0
    %1142 = vdwg.mxu0
    %v1143 = vmul.f32 %v1140, 0.35355338
    %v1144 = vlaneseq
    %v1145 = vshrl.u32 %v1144, 7
    %v1146 = vsub.s32 0, %v1145
    %v1147 = vrot.slane %v1064, %v1146
    %v1148 = vadd.f32 %v1143, %v1147
    %v1149 = vsel %vm179, -1e+30, %v1148
    %v1150 = vsel %vm184, %v1149, -inf
    %1151 = vmax.xlane.f32.xlu0 %v1150
    %v1152 = vpop.xlane.xlu0 %1151
    %v1153 = vsub.f32 %v1149, %v1152
    %v1154 = vmul.f32 %v1153, 1.442695
    %v1155 = vpow.pop %v1154
    %v1156 = vsel %vm184, %v1155, 0.0
    %1157 = vadd.xlane.f32.xlu0 %v1156
    %v1158 = vpop.xlane.xlu0 %1157
    %1159 = vrot.lane.b32.xlu0 %v172, 56
    %v1160 = vpop.permute.xlu0 %1159
    %v1163 = vsel %vm184, %v1155, 0
    %1165 = vmatprep.subr.mxu0 0.0
    %1166 = vmatpush1.msra.mxu0 %v1160
    %1167 = vmatprep.subr.mxu0 0.0
    %1168 = vmatpush1.msra.mxu0 0.0
    %1169 = vmatprep.subr.mxu0 0.0
    %1170 = vmatpush1.msra.mxu0 0.0
    %1171 = vmatprep.subr.mxu0 0.0
    %1172 = vmatpush1.msra.mxu0 0.0
    %1173 = vmatprep.subr.mxu0 0.0
    %1174 = vmatpush1.msra.mxu0 0.0
    %1175 = vmatprep.subr.mxu0 0.0
    %1176 = vmatpush1.msra.mxu0 0.0
    %1177 = vmatprep.subr.mxu0 0.0
    %1178 = vmatpush1.msra.mxu0 0.0
    %1179 = vmatprep.subr.mxu0 0.0
    %1180 = vmatpush1.msra.mxu0 0.0
    %1181 = vmatprep.subr.mxu0 0.0
    %1182 = vmatpush1.msra.mxu0 0.0
    %1183 = vmatprep.subr.mxu0 0.0
    %1184 = vmatpush1.msra.mxu0 0.0
    %1185 = vmatprep.subr.mxu0 0.0
    %1186 = vmatpush1.msra.mxu0 0.0
    %1187 = vmatprep.subr.mxu0 0.0
    %1188 = vmatpush1.msra.mxu0 0.0
    %1189 = vmatprep.subr.mxu0 0.0
    %1190 = vmatpush1.msra.mxu0 0.0
    %1191 = vmatprep.subr.mxu0 0.0
    %1192 = vmatpush1.msra.mxu0 0.0
    %1193 = vmatprep.subr.mxu0 0.0
    %1194 = vmatpush1.msra.mxu0 0.0
    %1195 = vmatprep.subr.mxu0 0.0
    %1196 = vmatpush1.msra.mxu0 0.0
    %1197 = vmatprep.subr.mxu0 0.0
    %1198 = vmatpush1.msra.mxu0 0.0
    %1199 = vmatprep.subr.mxu0 0.0
    %1200 = vmatpush1.msra.mxu0 0.0
    %1201 = vmatprep.subr.mxu0 0.0
    %1202 = vmatpush1.msra.mxu0 0.0
    %1203 = vmatprep.subr.mxu0 0.0
    %1204 = vmatpush1.msra.mxu0 0.0
    %1205 = vmatprep.subr.mxu0 0.0
    %1206 = vmatpush1.msra.mxu0 0.0
    %1207 = vmatprep.subr.mxu0 0.0
    %1208 = vmatpush1.msra.mxu0 0.0
    %1209 = vmatprep.subr.mxu0 0.0
    %1210 = vmatpush1.msra.mxu0 0.0
    %1211 = vmatprep.subr.mxu0 0.0
    %1212 = vmatpush1.msra.mxu0 0.0
    %1213 = vmatprep.subr.mxu0 0.0
    %1214 = vmatpush1.msra.mxu0 0.0
    %1215 = vmatprep.subr.mxu0 0.0
    %1216 = vmatpush1.msra.mxu0 0.0
    %1217 = vmatprep.subr.mxu0 0.0
    %1218 = vmatpush1.msra.mxu0 0.0
    %1219 = vmatprep.subr.mxu0 0.0
    %1220 = vmatpush1.msra.mxu0 0.0
    %1221 = vmatprep.subr.mxu0 0.0
    %1222 = vmatpush1.msra.mxu0 0.0
    %1223 = vmatprep.subr.mxu0 0.0
    %1224 = vmatpush1.msra.mxu0 0.0
    %1225 = vmatprep.subr.mxu0 0.0
    %1226 = vmatpush1.msra.mxu0 0.0
    %1227 = vmatprep.subr.mxu0 0.0
    %1228 = vmatpush1.msra.mxu0 0.0
    %1229 = vmatprep.mubr.f32.mxu0 0.0
    %1230 = vmatmul.mubr.f32.gmra.mrb[0].mxu0 %v1163
    %v1231 = vpop.f32.mrb[0].mxu0
    %v1232 = vadd.f32 0.0, %v1231
    %v1233 = vpop.f32.mrb[0].mxu0
    %1234 = vdwg.mxu0
    %v1235 = vrcp.pop %v1158
    %v1236 = vmul.f32 %v1232, %v1235
    %1238 = vrot.lane.b32.xlu0 %v1236, 8
    %v1239 = vpop.permute.xlu0 %1238
    %1241 = vst.msk [vmem:[#allocation2 + $0x8] sm:$0xff] %vm531, %v1239
    %v1242 = vld [vmem:[#allocation8 + $0x6] sm:$0x1]
    %1243 = vrot.lane.b32.xlu0 %v172, 112
    %v1244 = vpop.permute.xlu0 %1243
    %1245 = vrot.lane.b32.xlu0 %v172, 80
    %v1246 = vpop.permute.xlu0 %1245
    %v1247 = vsel %vm184, %v1244, 0
    %v1249 = vsel %vm184, %v1246, 0
    %1251 = vmatprep.subr.mxu0 0.0
    %1252 = vmatpush1.xpose.msra.mxu0 %v1249
    %1253 = vmatprep.subr.mxu0 0.0
    %1254 = vmatpush1.xpose.msra.mxu0 0.0
    %1255 = vmatprep.subr.mxu0 0.0
    %1256 = vmatpush1.xpose.msra.mxu0 0.0
    %1257 = vmatprep.subr.mxu0 0.0
    %1258 = vmatpush1.xpose.msra.mxu0 0.0
    %1259 = vmatprep.subr.mxu0 0.0
    %1260 = vmatpush1.xpose.msra.mxu0 0.0
    %1261 = vmatprep.subr.mxu0 0.0
    %1262 = vmatpush1.xpose.msra.mxu0 0.0
    %1263 = vmatprep.subr.mxu0 0.0
    %1264 = vmatpush1.xpose.msra.mxu0 0.0
    %1265 = vmatprep.subr.mxu0 0.0
    %1266 = vmatpush1.xpose.msra.mxu0 0.0
    %1267 = vmatprep.subr.mxu0 0.0
    %1268 = vmatpush1.xpose.msra.mxu0 0.0
    %1269 = vmatprep.subr.mxu0 0.0
    %1270 = vmatpush1.xpose.msra.mxu0 0.0
    %1271 = vmatprep.subr.mxu0 0.0
    %1272 = vmatpush1.xpose.msra.mxu0 0.0
    %1273 = vmatprep.subr.mxu0 0.0
    %1274 = vmatpush1.xpose.msra.mxu0 0.0
    %1275 = vmatprep.subr.mxu0 0.0
    %1276 = vmatpush1.xpose.msra.mxu0 0.0
    %1277 = vmatprep.subr.mxu0 0.0
    %1278 = vmatpush1.xpose.msra.mxu0 0.0
    %1279 = vmatprep.subr.mxu0 0.0
    %1280 = vmatpush1.xpose.msra.mxu0 0.0
    %1281 = vmatprep.subr.mxu0 0.0
    %1282 = vmatpush1.xpose.msra.mxu0 0.0
    %1283 = vmatprep.subr.mxu0 0.0
    %1284 = vmatpush1.xpose.msra.mxu0 0.0
    %1285 = vmatprep.subr.mxu0 0.0
    %1286 = vmatpush1.xpose.msra.mxu0 0.0
    %1287 = vmatprep.subr.mxu0 0.0
    %1288 = vmatpush1.xpose.msra.mxu0 0.0
    %1289 = vmatprep.subr.mxu0 0.0
    %1290 = vmatpush1.xpose.msra.mxu0 0.0
    %1291 = vmatprep.subr.mxu0 0.0
    %1292 = vmatpush1.xpose.msra.mxu0 0.0
    %1293 = vmatprep.subr.mxu0 0.0
    %1294 = vmatpush1.xpose.msra.mxu0 0.0
    %1295 = vmatprep.subr.mxu0 0.0
    %1296 = vmatpush1.xpose.msra.mxu0 0.0
    %1297 = vmatprep.subr.mxu0 0.0
    %1298 = vmatpush1.xpose.msra.mxu0 0.0
    %1299 = vmatprep.subr.mxu0 0.0
    %1300 = vmatpush1.xpose.msra.mxu0 0.0
    %1301 = vmatprep.subr.mxu0 0.0
    %1302 = vmatpush1.xpose.msra.mxu0 0.0
    %1303 = vmatprep.subr.mxu0 0.0
    %1304 = vmatpush1.xpose.msra.mxu0 0.0
    %1305 = vmatprep.subr.mxu0 0.0
    %1306 = vmatpush1.xpose.msra.mxu0 0.0
    %1307 = vmatprep.subr.mxu0 0.0
    %1308 = vmatpush1.xpose.msra.mxu0 0.0
    %1309 = vmatprep.subr.mxu0 0.0
    %1310 = vmatpush1.xpose.msra.mxu0 0.0
    %1311 = vmatprep.subr.mxu0 0.0
    %1312 = vmatpush1.xpose.msra.mxu0 0.0
    %1313 = vmatprep.subr.mxu0 0.0
    %1314 = vmatpush1.xpose.msra.mxu0 0.0
    %1315 = vmatprep.mubr.f32.mxu0 0.0
    %1316 = vmatmul.mubr.f32.gmra.mrb[0].mxu0 %v1247
    %v1317 = vpop.f32.mrb[0].mxu0
    %v1318 = vadd.f32 0.0, %v1317
    %v1319 = vpop.f32.mrb[0].mxu0
    %1320 = vdwg.mxu0
    %v1321 = vmul.f32 %v1318, 0.35355338
    %v1322 = vlaneseq
    %v1323 = vshrl.u32 %v1322, 7
    %v1324 = vsub.s32 0, %v1323
    %v1325 = vrot.slane %v1242, %v1324
    %v1326 = vadd.f32 %v1321, %v1325
    %v1327 = vsel %vm179, -1e+30, %v1326
    %v1328 = vsel %vm184, %v1327, -inf
    %1329 = vmax.xlane.f32.xlu0 %v1328
    %v1330 = vpop.xlane.xlu0 %1329
    %v1331 = vsub.f32 %v1327, %v1330
    %v1332 = vmul.f32 %v1331, 1.442695
    %v1333 = vpow.pop %v1332
    %v1334 = vsel %vm184, %v1333, 0.0
    %1335 = vadd.xlane.f32.xlu0 %v1334
    %v1336 = vpop.xlane.xlu0 %1335
    %1337 = vrot.lane.b32.xlu0 %v172, 48
    %v1338 = vpop.permute.xlu0 %1337
    %v1341 = vsel %vm184, %v1333, 0
    %1343 = vmatprep.subr.mxu0 0.0
    %1344 = vmatpush1.msra.mxu0 %v1338
    %1345 = vmatprep.subr.mxu0 0.0
    %1346 = vmatpush1.msra.mxu0 0.0
    %1347 = vmatprep.subr.mxu0 0.0
    %1348 = vmatpush1.msra.mxu0 0.0
    %1349 = vmatprep.subr.mxu0 0.0
    %1350 = vmatpush1.msra.mxu0 0.0
    %1351 = vmatprep.subr.mxu0 0.0
    %1352 = vmatpush1.msra.mxu0 0.0
    %1353 = vmatprep.subr.mxu0 0.0
    %1354 = vmatpush1.msra.mxu0 0.0
    %1355 = vmatprep.subr.mxu0 0.0
    %1356 = vmatpush1.msra.mxu0 0.0
    %1357 = vmatprep.subr.mxu0 0.0
    %1358 = vmatpush1.msra.mxu0 0.0
    %1359 = vmatprep.subr.mxu0 0.0
    %1360 = vmatpush1.msra.mxu0 0.0
    %1361 = vmatprep.subr.mxu0 0.0
    %1362 = vmatpush1.msra.mxu0 0.0
    %1363 = vmatprep.subr.mxu0 0.0
    %1364 = vmatpush1.msra.mxu0 0.0
    %1365 = vmatprep.subr.mxu0 0.0
    %1366 = vmatpush1.msra.mxu0 0.0
    %1367 = vmatprep.subr.mxu0 0.0
    %1368 = vmatpush1.msra.mxu0 0.0
    %1369 = vmatprep.subr.mxu0 0.0
    %1370 = vmatpush1.msra.mxu0 0.0
    %1371 = vmatprep.subr.mxu0 0.0
    %1372 = vmatpush1.msra.mxu0 0.0
    %1373 = vmatprep.subr.mxu0 0.0
    %1374 = vmatpush1.msra.mxu0 0.0
    %1375 = vmatprep.subr.mxu0 0.0
    %1376 = vmatpush1.msra.mxu0 0.0
    %1377 = vmatprep.subr.mxu0 0.0
    %1378 = vmatpush1.msra.mxu0 0.0
    %1379 = vmatprep.subr.mxu0 0.0
    %1380 = vmatpush1.msra.mxu0 0.0
    %1381 = vmatprep.subr.mxu0 0.0
    %1382 = vmatpush1.msra.mxu0 0.0
    %1383 = vmatprep.subr.mxu0 0.0
    %1384 = vmatpush1.msra.mxu0 0.0
    %1385 = vmatprep.subr.mxu0 0.0
    %1386 = vmatpush1.msra.mxu0 0.0
    %1387 = vmatprep.subr.mxu0 0.0
    %1388 = vmatpush1.msra.mxu0 0.0
    %1389 = vmatprep.subr.mxu0 0.0
    %1390 = vmatpush1.msra.mxu0 0.0
    %1391 = vmatprep.subr.mxu0 0.0
    %1392 = vmatpush1.msra.mxu0 0.0
    %1393 = vmatprep.subr.mxu0 0.0
    %1394 = vmatpush1.msra.mxu0 0.0
    %1395 = vmatprep.subr.mxu0 0.0
    %1396 = vmatpush1.msra.mxu0 0.0
    %1397 = vmatprep.subr.mxu0 0.0
    %1398 = vmatpush1.msra.mxu0 0.0
    %1399 = vmatprep.subr.mxu0 0.0
    %1400 = vmatpush1.msra.mxu0 0.0
    %1401 = vmatprep.subr.mxu0 0.0
    %1402 = vmatpush1.msra.mxu0 0.0
    %1403 = vmatprep.subr.mxu0 0.0
    %1404 = vmatpush1.msra.mxu0 0.0
    %1405 = vmatprep.subr.mxu0 0.0
    %1406 = vmatpush1.msra.mxu0 0.0
    %1407 = vmatprep.mubr.f32.mxu0 0.0
    %1408 = vmatmul.mubr.f32.gmra.mrb[0].mxu0 %v1341
    %v1409 = vpop.f32.mrb[0].mxu0
    %v1410 = vadd.f32 0.0, %v1409
    %v1411 = vpop.f32.mrb[0].mxu0
    %1412 = vdwg.mxu0
    %v1413 = vrcp.pop %v1336
    %v1414 = vmul.f32 %v1410, %v1413
    %1416 = vrot.lane.b32.xlu0 %v1414, 16
    %v1417 = vpop.permute.xlu0 %1416
    %1419 = vst.msk [vmem:[#allocation2 + $0x8] sm:$0xff] %vm710, %v1417
    %v1420 = vld [vmem:[#allocation8 + $0x7] sm:$0x1]
    %1421 = vrot.lane.b32.xlu0 %v172, 104
    %v1422 = vpop.permute.xlu0 %1421
    %1423 = vrot.lane.b32.xlu0 %v172, 72
    %v1424 = vpop.permute.xlu0 %1423
    %v1425 = vsel %vm184, %v1422, 0
    %v1427 = vsel %vm184, %v1424, 0
    %1429 = vmatprep.subr.mxu0 0.0
    %1430 = vmatpush1.xpose.msra.mxu0 %v1427
    %1431 = vmatprep.subr.mxu0 0.0
    %1432 = vmatpush1.xpose.msra.mxu0 0.0
    %1433 = vmatprep.subr.mxu0 0.0
    %1434 = vmatpush1.xpose.msra.mxu0 0.0
    %1435 = vmatprep.subr.mxu0 0.0
    %1436 = vmatpush1.xpose.msra.mxu0 0.0
    %1437 = vmatprep.subr.mxu0 0.0
    %1438 = vmatpush1.xpose.msra.mxu0 0.0
    %1439 = vmatprep.subr.mxu0 0.0
    %1440 = vmatpush1.xpose.msra.mxu0 0.0
    %1441 = vmatprep.subr.mxu0 0.0
    %1442 = vmatpush1.xpose.msra.mxu0 0.0
    %1443 = vmatprep.subr.mxu0 0.0
    %1444 = vmatpush1.xpose.msra.mxu0 0.0
    %1445 = vmatprep.subr.mxu0 0.0
    %1446 = vmatpush1.xpose.msra.mxu0 0.0
    %1447 = vmatprep.subr.mxu0 0.0
    %1448 = vmatpush1.xpose.msra.mxu0 0.0
    %1449 = vmatprep.subr.mxu0 0.0
    %1450 = vmatpush1.xpose.msra.mxu0 0.0
    %1451 = vmatprep.subr.mxu0 0.0
    %1452 = vmatpush1.xpose.msra.mxu0 0.0
    %1453 = vmatprep.subr.mxu0 0.0
    %1454 = vmatpush1.xpose.msra.mxu0 0.0
    %1455 = vmatprep.subr.mxu0 0.0
    %1456 = vmatpush1.xpose.msra.mxu0 0.0
    %1457 = vmatprep.subr.mxu0 0.0
    %1458 = vmatpush1.xpose.msra.mxu0 0.0
    %1459 = vmatprep.subr.mxu0 0.0
    %1460 = vmatpush1.xpose.msra.mxu0 0.0
    %1461 = vmatprep.subr.mxu0 0.0
    %1462 = vmatpush1.xpose.msra.mxu0 0.0
    %1463 = vmatprep.subr.mxu0 0.0
    %1464 = vmatpush1.xpose.msra.mxu0 0.0
    %1465 = vmatprep.subr.mxu0 0.0
    %1466 = vmatpush1.xpose.msra.mxu0 0.0
    %1467 = vmatprep.subr.mxu0 0.0
    %1468 = vmatpush1.xpose.msra.mxu0 0.0
    %1469 = vmatprep.subr.mxu0 0.0
    %1470 = vmatpush1.xpose.msra.mxu0 0.0
    %1471 = vmatprep.subr.mxu0 0.0
    %1472 = vmatpush1.xpose.msra.mxu0 0.0
    %1473 = vmatprep.subr.mxu0 0.0
    %1474 = vmatpush1.xpose.msra.mxu0 0.0
    %1475 = vmatprep.subr.mxu0 0.0
    %1476 = vmatpush1.xpose.msra.mxu0 0.0
    %1477 = vmatprep.subr.mxu0 0.0
    %1478 = vmatpush1.xpose.msra.mxu0 0.0
    %1479 = vmatprep.subr.mxu0 0.0
    %1480 = vmatpush1.xpose.msra.mxu0 0.0
    %1481 = vmatprep.subr.mxu0 0.0
    %1482 = vmatpush1.xpose.msra.mxu0 0.0
    %1483 = vmatprep.subr.mxu0 0.0
    %1484 = vmatpush1.xpose.msra.mxu0 0.0
    %1485 = vmatprep.subr.mxu0 0.0
    %1486 = vmatpush1.xpose.msra.mxu0 0.0
    %1487 = vmatprep.subr.mxu0 0.0
    %1488 = vmatpush1.xpose.msra.mxu0 0.0
    %1489 = vmatprep.subr.mxu0 0.0
    %1490 = vmatpush1.xpose.msra.mxu0 0.0
    %1491 = vmatprep.subr.mxu0 0.0
    %1492 = vmatpush1.xpose.msra.mxu0 0.0
    %1493 = vmatprep.mubr.f32.mxu0 0.0
    %1494 = vmatmul.mubr.f32.gmra.mrb[0].mxu0 %v1425
    %v1495 = vpop.f32.mrb[0].mxu0
    %v1496 = vadd.f32 0.0, %v1495
    %v1497 = vpop.f32.mrb[0].mxu0
    %1498 = vdwg.mxu0
    %v1499 = vmul.f32 %v1496, 0.35355338
    %v1500 = vlaneseq
    %v1501 = vshrl.u32 %v1500, 7
    %v1502 = vsub.s32 0, %v1501
    %v1503 = vrot.slane %v1420, %v1502
    %v1504 = vadd.f32 %v1499, %v1503
    %v1505 = vsel %vm179, -1e+30, %v1504
    %v1506 = vsel %vm184, %v1505, -inf
    %1507 = vmax.xlane.f32.xlu0 %v1506
    %v1508 = vpop.xlane.xlu0 %1507
    %v1509 = vsub.f32 %v1505, %v1508
    %v1510 = vmul.f32 %v1509, 1.442695
    %v1511 = vpow.pop %v1510
    %v1512 = vsel %vm184, %v1511, 0.0
    %1513 = vadd.xlane.f32.xlu0 %v1512
    %v1514 = vpop.xlane.xlu0 %1513
    %1515 = vrot.lane.b32.xlu0 %v172, 40
    %v1516 = vpop.permute.xlu0 %1515
    %v1519 = vsel %vm184, %v1511, 0
    %1521 = vmatprep.subr.mxu0 0.0
    %1522 = vmatpush1.msra.mxu0 %v1516
    %1523 = vmatprep.subr.mxu0 0.0
    %1524 = vmatpush1.msra.mxu0 0.0
    %1525 = vmatprep.subr.mxu0 0.0
    %1526 = vmatpush1.msra.mxu0 0.0
    %1527 = vmatprep.subr.mxu0 0.0
    %1528 = vmatpush1.msra.mxu0 0.0
    %1529 = vmatprep.subr.mxu0 0.0
    %1530 = vmatpush1.msra.mxu0 0.0
    %1531 = vmatprep.subr.mxu0 0.0
    %1532 = vmatpush1.msra.mxu0 0.0
    %1533 = vmatprep.subr.mxu0 0.0
    %1534 = vmatpush1.msra.mxu0 0.0
    %1535 = vmatprep.subr.mxu0 0.0
    %1536 = vmatpush1.msra.mxu0 0.0
    %1537 = vmatprep.subr.mxu0 0.0
    %1538 = vmatpush1.msra.mxu0 0.0
    %1539 = vmatprep.subr.mxu0 0.0
    %1540 = vmatpush1.msra.mxu0 0.0
    %1541 = vmatprep.subr.mxu0 0.0
    %1542 = vmatpush1.msra.mxu0 0.0
    %1543 = vmatprep.subr.mxu0 0.0
    %1544 = vmatpush1.msra.mxu0 0.0
    %1545 = vmatprep.subr.mxu0 0.0
    %1546 = vmatpush1.msra.mxu0 0.0
    %1547 = vmatprep.subr.mxu0 0.0
    %1548 = vmatpush1.msra.mxu0 0.0
    %1549 = vmatprep.subr.mxu0 0.0
    %1550 = vmatpush1.msra.mxu0 0.0
    %1551 = vmatprep.subr.mxu0 0.0
    %1552 = vmatpush1.msra.mxu0 0.0
    %1553 = vmatprep.subr.mxu0 0.0
    %1554 = vmatpush1.msra.mxu0 0.0
    %1555 = vmatprep.subr.mxu0 0.0
    %1556 = vmatpush1.msra.mxu0 0.0
    %1557 = vmatprep.subr.mxu0 0.0
    %1558 = vmatpush1.msra.mxu0 0.0
    %1559 = vmatprep.subr.mxu0 0.0
    %1560 = vmatpush1.msra.mxu0 0.0
    %1561 = vmatprep.subr.mxu0 0.0
    %1562 = vmatpush1.msra.mxu0 0.0
    %1563 = vmatprep.subr.mxu0 0.0
    %1564 = vmatpush1.msra.mxu0 0.0
    %1565 = vmatprep.subr.mxu0 0.0
    %1566 = vmatpush1.msra.mxu0 0.0
    %1567 = vmatprep.subr.mxu0 0.0
    %1568 = vmatpush1.msra.mxu0 0.0
    %1569 = vmatprep.subr.mxu0 0.0
    %1570 = vmatpush1.msra.mxu0 0.0
    %1571 = vmatprep.subr.mxu0 0.0
    %1572 = vmatpush1.msra.mxu0 0.0
    %1573 = vmatprep.subr.mxu0 0.0
    %1574 = vmatpush1.msra.mxu0 0.0
    %1575 = vmatprep.subr.mxu0 0.0
    %1576 = vmatpush1.msra.mxu0 0.0
    %1577 = vmatprep.subr.mxu0 0.0
    %1578 = vmatpush1.msra.mxu0 0.0
    %1579 = vmatprep.subr.mxu0 0.0
    %1580 = vmatpush1.msra.mxu0 0.0
    %1581 = vmatprep.subr.mxu0 0.0
    %1582 = vmatpush1.msra.mxu0 0.0
    %1583 = vmatprep.subr.mxu0 0.0
    %1584 = vmatpush1.msra.mxu0 0.0
    %1585 = vmatprep.mubr.f32.mxu0 0.0
    %1586 = vmatmul.mubr.f32.gmra.mrb[0].mxu0 %v1519
    %v1587 = vpop.f32.mrb[0].mxu0
    %v1588 = vadd.f32 0.0, %v1587
    %v1589 = vpop.f32.mrb[0].mxu0
    %1590 = vdwg.mxu0
    %v1591 = vrcp.pop %v1514
    %v1592 = vmul.f32 %v1588, %v1591
    %1594 = vrot.lane.b32.xlu0 %v1592, 24
    %v1595 = vpop.permute.xlu0 %1594
    %1597 = vst.msk [vmem:[#allocation2 + $0x8] sm:$0xff] %vm889, %v1595
    %v1598 = vld [vmem:[#allocation2] sm:$0xff]
    %v1599 = vld [vmem:[#allocation2 + $0x8] sm:$0xff]
    %v1600 = vld [vmem:[#allocation9] sm:$0xff]
    %v1601 = vld [vmem:[#allocation9 + $0x8] sm:$0xff]
    %v1602 = vld [vmem:[#allocation9 + $0x10] sm:$0xff]
    %v1603 = vld [vmem:[#allocation9 + $0x18] sm:$0xff]
    %v1604 = vld [vmem:[%s5] sm:$0x1]
    %v1606 = vlaneseq
    %v1607 = vshrl.u32 %v1606, 7
    %v1608 = vsub.s32 0, %v1607
    %v1609 = vrot.slane %v1604, %v1608
    %v1612 = vsel %vm93, %v1598, 0
    %v1615 = vsel %vm93, %v1599, 0
    %1617 = vmatprep.subr.mxu0 0.0
    %1618 = vmatpush1.msra.mxu0 %v1600
    %1619 = vmatprep.subr.mxu0 0.0
    %1620 = vmatpush1.msra.mxu0 %v1601
    %1621 = vmatprep.subr.mxu0 0.0
    %1622 = vmatpush1.msra.mxu0 %v1602
    %1623 = vmatprep.subr.mxu0 0.0
    %1624 = vmatpush1.msra.mxu0 %v1603
    %1625 = vmatprep.subr.mxu0 0.0
    %1626 = vmatpush1.msra.mxu0 0.0
    %1627 = vmatprep.subr.mxu0 0.0
    %1628 = vmatpush1.msra.mxu0 0.0
    %1629 = vmatprep.subr.mxu0 0.0
    %1630 = vmatpush1.msra.mxu0 0.0
    %1631 = vmatprep.subr.mxu0 0.0
    %1632 = vmatpush1.msra.mxu0 0.0
    %1633 = vmatprep.subr.mxu0 0.0
    %1634 = vmatpush1.msra.mxu0 0.0
    %1635 = vmatprep.subr.mxu0 0.0
    %1636 = vmatpush1.msra.mxu0 0.0
    %1637 = vmatprep.subr.mxu0 0.0
    %1638 = vmatpush1.msra.mxu0 0.0
    %1639 = vmatprep.subr.mxu0 0.0
    %1640 = vmatpush1.msra.mxu0 0.0
    %1641 = vmatprep.subr.mxu0 0.0
    %1642 = vmatpush1.msra.mxu0 0.0
    %1643 = vmatprep.subr.mxu0 0.0
    %1644 = vmatpush1.msra.mxu0 0.0
    %1645 = vmatprep.subr.mxu0 0.0
    %1646 = vmatpush1.msra.mxu0 0.0
    %1647 = vmatprep.subr.mxu0 0.0
    %1648 = vmatpush1.msra.mxu0 0.0
    %1649 = vmatprep.subr.mxu0 0.0
    %1650 = vmatpush1.msra.mxu0 0.0
    %1651 = vmatprep.subr.mxu0 0.0
    %1652 = vmatpush1.msra.mxu0 0.0
    %1653 = vmatprep.subr.mxu0 0.0
    %1654 = vmatpush1.msra.mxu0 0.0
    %1655 = vmatprep.subr.mxu0 0.0
    %1656 = vmatpush1.msra.mxu0 0.0
    %1657 = vmatprep.subr.mxu0 0.0
    %1658 = vmatpush1.msra.mxu0 0.0
    %1659 = vmatprep.subr.mxu0 0.0
    %1660 = vmatpush1.msra.mxu0 0.0
    %1661 = vmatprep.subr.mxu0 0.0
    %1662 = vmatpush1.msra.mxu0 0.0
    %1663 = vmatprep.subr.mxu0 0.0
    %1664 = vmatpush1.msra.mxu0 0.0
    %1665 = vmatprep.subr.mxu0 0.0
    %1666 = vmatpush1.msra.mxu0 0.0
    %1667 = vmatprep.subr.mxu0 0.0
    %1668 = vmatpush1.msra.mxu0 0.0
    %1669 = vmatprep.subr.mxu0 0.0
    %1670 = vmatpush1.msra.mxu0 0.0
    %1671 = vmatprep.subr.mxu0 0.0
    %1672 = vmatpush1.msra.mxu0 0.0
    %1673 = vmatprep.subr.mxu0 0.0
    %1674 = vmatpush1.msra.mxu0 0.0
    %1675 = vmatprep.subr.mxu0 0.0
    %1676 = vmatpush1.msra.mxu0 0.0
    %1677 = vmatprep.subr.mxu0 0.0
    %1678 = vmatpush1.msra.mxu0 0.0
    %1679 = vmatprep.subr.mxu0 0.0
    %1680 = vmatpush1.msra.mxu0 0.0
    %1681 = vmatprep.mubr.f32.mxu0 0.0
    %1682 = vmatmul.mubr.f32.gmra.mrb[0].mxu0 %v1612
    %v1683 = vpop.f32.mrb[0].mxu0
    %v1684 = vadd.f32 %v1609, %v1683
    %v1685 = vpop.f32.mrb[0].mxu0
    %1686 = vmatprep.mubr.f32.mxu0 0.0
    %1687 = vmatmul.mubr.f32.gmra.mrb[0].mxu0 %v1615
    %v1688 = vpop.f32.mrb[0].mxu0
    %v1689 = vadd.f32 %v1609, %v1688
    %v1690 = vpop.f32.mrb[0].mxu0
    %1691 = vdwg.mxu0
    %v1692 = vld [vmem:[%s6] sm:$0xff]
    %v1693 = vld [vmem:[%s6 + $0x8] sm:$0xff]
    %v1694 = vadd.f32 %v1684, %v1692
    %v1695 = vadd.f32 %v1689, %v1693
    %1696 = vst.msk [vmem:[#allocation11] sm:$0xff] %vm93, %v1694
    %1697 = vst.msk [vmem:[#allocation11 + $0x8] sm:$0xff] %vm93, %v1695
    // Predicated region
    $region46: #{tpu_custom_call.1} parent=1 // pred_check
      _
    $region47: #{tpu_custom_call.1} parent=1 // pred_check_branch
      %1699 = sbr.rel (0) target = $region49
    $region48: #{tpu_custom_call.1} parent=1 // pred_region
      %s1701 = ssub.s32 256, 256
      %1702 = vsyncadd [#allocation5], %s1701
      %s1703 = sshll.u32 [#allocation11], 4
      %s1704 = int_to_ptr.vmem [resolvable:$true] %s1703
      %1709 = dma.vmem_to_hbm [thread:$0]  %s1704, 256, %s7, [#allocation5], 128, 128, 8
    $region49: #{tpu_custom_call.1} parent=1 // pred_fallthru
      _
    // Predicated region
    $region50: #{tpu_custom_call.1} parent=1 // pred_check
      _
    $region51: #{tpu_custom_call.1} parent=1 // pred_check_branch
      %1711 = sbr.rel (0) target = $region53
    $region52: #{tpu_custom_call.1} parent=1 // pred_region
      %1712 = dma.done [#allocation5], 256
    $region53: #{tpu_custom_call.1} parent=1 // pred_fallthru
      _
    %1713 = vsyncpa [#allocation4], 1
    %1714 = vsyncpa [#allocation7], 1
    %1715 = vsyncpa [#allocation10], 1
    %1716 = vsyncpa [#allocation5], 1

</llo_original>
